<compile_context>
chip_gen: v7x
topology: tpu7x:2x2x1
jax: 0.10.0
libtpu: 0.0.40
codegen_flags: <defaults>
</compile_context>

<pallas_src>
import functools

import jax
import jax.numpy as jnp
from jax.experimental import pallas as pl
from jax.experimental.pallas import tpu as pltpu

BN_EPS = 1e-5


def _round_up(n, m):
    return ((n + m - 1) // m) * m


def _bottleneck_kernel(
    x_ref,            # [TB, IN_pad]   bf16 (only read during pass 0)
    w1_ref, v1_ref,   # [IN_pad, H1]   bf16 ; [3, H1] f32 (bias, gamma, beta)
    w2_ref, v2_ref,   # [H1, H2]       bf16 ; [3, H2] f32
    wb_ref, bb_ref,   # [H2, BD_pad]   bf16 ; [1, BD_pad] f32
    o_ref,            # [TB, BD_pad]   f32 (written during pass 2 only)
    s1_ref, s2_ref,   # [2, H] f32: during passes 0/1 hold (sum, sumsq); after the
                      # pass transition they hold the folded BN (scale, shift).
    h1_ref, h2_ref,   # [B_pad, H] f32 pre-BN activation stash (persistent VMEM)
    *, true_b, tb, pad_rows, eps,
):
    p = pl.program_id(0)      # 0: layer-1 stats, 1: layer-2 stats, 2: finalize
    i = pl.program_id(1)      # batch tile
    nb = pl.num_programs(1)
    inv_b = 1.0 / float(true_b)

    v1 = v1_ref[...]
    b1, g1, be1 = v1[0:1, :], v1[1:2, :], v1[2:3, :]
    v2 = v2_ref[...]
    b2, g2, be2 = v2[0:1, :], v2[1:2, :], v2[2:3, :]

    def accum_stats(s_ref, hp):
        def upd(h):
            s_ref[...] += jnp.concatenate(
                [jnp.sum(h, axis=0, keepdims=True),
                 jnp.sum(h * h, axis=0, keepdims=True)], axis=0)

        if pad_rows == 0:
            upd(hp)                     # no batch padding -> never mask (static)
        else:
            is_last = i == nb - 1

            @pl.when(is_last)           # only the last tile holds padded rows
            def _():
                row = i * tb + jax.lax.broadcasted_iota(jnp.int32, (tb, 1), 0)
                upd(hp * (row < true_b).astype(jnp.float32))

            @pl.when(jnp.logical_not(is_last))
            def _():
                upd(hp)

    def fold_bn(s_ref, g, be):
        # (sum, sumsq) -> per-feature (scale, shift); written back in place.
        mean = s_ref[0:1, :] * inv_b
        var = s_ref[1:2, :] * inv_b - mean * mean      # biased variance (torch train)
        scale = g * jax.lax.rsqrt(var + eps)
        shift = be - mean * scale
        s_ref[...] = jnp.concatenate([scale, shift], axis=0)

    def bn_relu(hp, s_ref):
        return jnp.maximum(hp * s_ref[0:1, :] + s_ref[1:2, :], 0.0)

    rows = pl.ds(i * tb, tb)            # this tile's rows in the activation stash

    # ---- pass 0: layer-1 pre-activations -> stash + batch statistics ----------
    @pl.when(jnp.logical_and(p == 0, i == 0))
    def _():
        s1_ref[...] = jnp.zeros_like(s1_ref)
        s2_ref[...] = jnp.zeros_like(s2_ref)

    @pl.when(p == 0)
    def _():
        h1p = jnp.dot(x_ref[...], w1_ref[...],
                      preferred_element_type=jnp.float32) + b1
        h1_ref[rows, :] = h1p
        accum_stats(s1_ref, h1p)

    # ---- pass 1: BN1+ReLU from stash -> layer-2 pre-acts -> stash + stats -----
    @pl.when(jnp.logical_and(p == 1, i == 0))
    def _():
        fold_bn(s1_ref, g1, be1)

    @pl.when(p == 1)
    def _():
        h1 = bn_relu(h1_ref[rows, :], s1_ref)
        h2p = jnp.dot(h1.astype(jnp.bfloat16), w2_ref[...],
                      preferred_element_type=jnp.float32) + b2
        h2_ref[rows, :] = h2p
        accum_stats(s2_ref, h2p)

    # ---- pass 2: BN2+ReLU from stash -> bottleneck Linear -> Tanh -> out ------
    @pl.when(jnp.logical_and(p == 2, i == 0))
    def _():
        fold_bn(s2_ref, g2, be2)

    @pl.when(p == 2)
    def _():
        h2 = bn_relu(h2_ref[rows, :], s2_ref)
        z = jnp.dot(h2.astype(jnp.bfloat16), wb_ref[...],
                    preferred_element_type=jnp.float32) + bb_ref[...]
        o_ref[...] = jnp.tanh(z)


def pack_params(params):
    """One-time weight padding / bf16 casting / (bias, gamma, beta) packing.

    Hoisted out of the per-call path (perf-review item): call once, reuse.
    """
    (w1, b1, g1, be1, w2, b2, g2, be2, wb, bb) = params
    in_dim, h1 = w1.shape
    h2 = w2.shape[1]
    bd = wb.shape[1]
    in_pad = _round_up(in_dim, 128)
    bd_pad = _round_up(bd, 128)

    w1p = jnp.zeros((in_pad, h1), jnp.bfloat16).at[:in_dim, :].set(
        w1.astype(jnp.bfloat16))
    w2p = w2.astype(jnp.bfloat16)
    wbp = jnp.zeros((h2, bd_pad), jnp.bfloat16).at[:, :bd].set(wb.astype(jnp.bfloat16))
    bbp = jnp.zeros((1, bd_pad), jnp.float32).at[:, :bd].set(bb)
    v1 = jnp.concatenate([b1, g1, be1], axis=0)   # [3, H1] f32
    v2 = jnp.concatenate([b2, g2, be2], axis=0)   # [3, H2] f32
    return {"w1": w1p, "v1": v1, "w2": w2p, "v2": v2, "wb": wbp, "bb": bbp,
            "in_dim": in_dim, "out_dim": bd}


@functools.partial(jax.jit, static_argnames=("in_dim", "out_dim"))
def _forward(x2d, w1p, v1, w2p, v2, wbp, bbp, *, in_dim, out_dim):
    B = x2d.shape[0]
    IN_pad, H1 = w1p.shape
    H2 = w2p.shape[1]
    BD_pad = wbp.shape[1]

    TB = _round_up(B, 16) if B <= 1024 else 1024
    B_pad = _round_up(B, TB)
    NB = B_pad // TB
    pad_rows = B_pad - B

    # VMEM budget (activation stash dominates).
    stash_bytes = B_pad * (H1 + H2) * 4
    if stash_bytes > (32 << 20):
        # TODO(synk): recompute (no-stash) fallback for very large batches.
        raise NotImplementedError("batch too large for the VMEM activation stash")
    resident_bytes = 2 * ((IN_pad * H1 + H1 * H2 + H2 * BD_pad) * 2
                          + (3 * H1 + 3 * H2 + BD_pad) * 4)
    tile_bytes = 2 * (TB * IN_pad * 2 + TB * BD_pad * 4)
    vmem_needed = stash_bytes + resident_bytes + tile_bytes + (2 << 20)

    # Pad batch to a tile multiple and features to a full lane width; bf16 for MXU.
    xp = jnp.zeros((B_pad, IN_pad), jnp.bfloat16).at[:B, :in_dim].set(
        x2d.astype(jnp.bfloat16))

    kernel = functools.partial(_bottleneck_kernel, true_b=B, tb=TB,
                               pad_rows=pad_rows, eps=BN_EPS)

    cp_kwargs = dict(dimension_semantics=("arbitrary", "arbitrary"))
    if vmem_needed > (12 << 20):       # default scoped VMEM limit is 16 MiB on v5e
        cp_kwargs["vmem_limit_bytes"] = int(vmem_needed)

    out = pl.pallas_call(
        kernel,
        out_shape=jax.ShapeDtypeStruct((B_pad, BD_pad), jnp.float32),
        grid_spec=pltpu.PrefetchScalarGridSpec(
            num_scalar_prefetch=0,
            grid=(3, NB),                       # (BN pass, batch tile)
            in_specs=[
                # x is only read in pass 0; freeze its block index afterwards so
                # it is not re-DMA'd during passes 1/2.
                pl.BlockSpec((TB, IN_pad),
                             lambda p, i: (jnp.where(p == 0, i, NB - 1), 0)),
                # Resident weights / packed per-layer vectors (constant index).
                pl.BlockSpec((IN_pad, H1), lambda p, i: (0, 0)),
                pl.BlockSpec((3, H1),      lambda p, i: (0, 0)),
                pl.BlockSpec((H1, H2),     lambda p, i: (0, 0)),
                pl.BlockSpec((3, H2),      lambda p, i: (0, 0)),
                pl.BlockSpec((H2, BD_pad), lambda p, i: (0, 0)),
                pl.BlockSpec((1, BD_pad),  lambda p, i: (0, 0)),
            ],
            # Keep the output block index constant during the two stats passes so
            # no uninitialized tile is flushed to HBM before pass 2 writes it.
            out_specs=pl.BlockSpec((TB, BD_pad),
                                   lambda p, i: (jnp.where(p == 2, i, 0), 0)),
            scratch_shapes=[
                pltpu.VMEM((2, H1), jnp.float32),      # L1 sum/sumsq -> scale/shift
                pltpu.VMEM((2, H2), jnp.float32),      # L2 sum/sumsq -> scale/shift
                pltpu.VMEM((B_pad, H1), jnp.float32),  # pre-BN layer-1 stash
                pltpu.VMEM((B_pad, H2), jnp.float32),  # pre-BN layer-2 stash
            ],
        ),
        compiler_params=pltpu.CompilerParams(**cp_kwargs),
    )(xp, w1p, v1, w2p, v2, wbp, bbp)

    return out[:B, :out_dim]


def bottleneck_network_forward(x, packed):
    """x: [B, input_dim] or [B, S, D] (flattened to [B, S*D] like torch .flatten(1))."""
    if x.ndim == 3:
        x = x.reshape(x.shape[0], -1)
    return _forward(x, packed["w1"], packed["v1"], packed["w2"], packed["v2"],
                    packed["wb"], packed["bb"],
                    in_dim=packed["in_dim"], out_dim=packed["out_dim"])


def init_params(key, input_dim, bottleneck_dim, hidden_dims=(512, 256)):
    """Parameter init matching the module's shapes (PyTorch default Linear init).

    Linear weights are stored as [in, out]; BatchNorm gamma=1, beta=0.
    """
    dims = [input_dim, *hidden_dims]
    params = []
    for i in range(len(hidden_dims)):
        fan_in, fan_out = dims[i], dims[i + 1]
        key, kw, kb = jax.random.split(key, 3)
        bound = 1.0 / jnp.sqrt(fan_in)
        w = jax.random.uniform(kw, (fan_in, fan_out), jnp.float32, -bound, bound)
        b = jax.random.uniform(kb, (1, fan_out), jnp.float32, -bound, bound)
        gamma = jnp.ones((1, fan_out), jnp.float32)
        beta = jnp.zeros((1, fan_out), jnp.float32)
        params += [w, b, gamma, beta]
    fan_in = dims[-1]
    key, kw, kb = jax.random.split(key, 3)
    bound = 1.0 / jnp.sqrt(fan_in)
    wb = jax.random.uniform(kw, (fan_in, bottleneck_dim), jnp.float32, -bound, bound)
    bb = jax.random.uniform(kb, (1, bottleneck_dim), jnp.float32, -bound, bound)
    params += [wb, bb]
    return tuple(params)


def reference_forward(x, params):
    """Pure-JAX reference mirroring the kernel's precision policy (bf16 matmul
    operands, f32 accumulation / BN / activations); with f32 operands it is exactly
    the PyTorch training-mode forward."""
    if x.ndim == 3:
        x = x.reshape(x.shape[0], -1)
    (w1, b1, g1, be1, w2, b2, g2, be2, wb, bb) = params

    def cast(a):
        return a.astype(jnp.bfloat16).astype(jnp.float32)

    def layer(h, w, b, g, be):
        hp = cast(h) @ cast(w) + b
        mean = jnp.mean(hp, axis=0, keepdims=True)
        var = jnp.mean(hp * hp, axis=0, keepdims=True) - mean * mean
        h = (hp - mean) * jax.lax.rsqrt(var + BN_EPS) * g + be
        return jnp.maximum(h, 0.0)

    h = layer(x, w1, b1, g1, be1)
    h = layer(h, w2, b2, g2, be2)
    return jnp.tanh(cast(h) @ cast(wb) + bb)


if __name__ == "__main__":
    key = jax.random.PRNGKey(0)
    k_x, k_p, k_x2, k_x3 = jax.random.split(key, 4)

    # Small 3D input [B=8, S=8, D=8] -> flattened input_dim = 64
    B, S, D = 8, 8, 8
    input_dim = S * D
    bottleneck_dim = 32
    hidden_dims = (512, 256)

    params = init_params(k_p, input_dim, bottleneck_dim, hidden_dims)
    packed = pack_params(params)      # one-time weight pad / cast / pack (hoisted)

    # Check 1: 3-D input, single batch tile (TB=16, grid=(3,1)).
    x = jax.random.normal(k_x, (B, S, D), jnp.float32)
    out = jax.block_until_ready(bottleneck_network_forward(x, packed))
    ref = reference_forward(x, params)
    assert out.shape == (B, bottleneck_dim)
    err = float(jnp.max(jnp.abs(out - ref)))
    assert err < 2e-3, f"mismatch vs reference (B=8): max abs err {err}"

    # Check 2: B=300 -> one padded tile of 304 rows (masked batch statistics).
    B2 = 300
    x2 = jax.random.normal(k_x2, (B2, input_dim), jnp.float32)
    out2 = jax.block_until_ready(bottleneck_network_forward(x2, packed))
    ref2 = reference_forward(x2, params)
    assert out2.shape == (B2, bottleneck_dim)
    err2 = float(jnp.max(jnp.abs(out2 - ref2)))
    assert err2 < 2e-3, f"mismatch vs reference (B=300): max abs err {err2}"

    # Check 3: B=1200 -> two tiles of 1024 (multi-tile stash, masked last tile,
    # frozen x / output block indices across passes).
    B3 = 1200
    x3 = jax.random.normal(k_x3, (B3, input_dim), jnp.float32)
    out3 = jax.block_until_ready(bottleneck_network_forward(x3, packed))
    ref3 = reference_forward(x3, params)
    assert out3.shape == (B3, bottleneck_dim)
    err3 = float(jnp.max(jnp.abs(out3 - ref3)))
    assert err3 < 2e-3, f"mismatch vs reference (B=1200): max abs err {err3}"

    print("KERNEL_OK")
</pallas_src>

<mosaic_0001>
module attributes {stable_mosaic.version = 11 : i64} {
  func.func @_bottleneck_kernel(%arg0: i32, %arg1: i32, %arg2: memref<16x128xbf16, #tpu.memory_space<vmem>>, %arg3: memref<128x512xbf16, #tpu.memory_space<vmem>>, %arg4: memref<3x512xf32, #tpu.memory_space<vmem>>, %arg5: memref<512x256xbf16, #tpu.memory_space<vmem>>, %arg6: memref<3x256xf32, #tpu.memory_space<vmem>>, %arg7: memref<256x128xbf16, #tpu.memory_space<vmem>>, %arg8: memref<1x128xf32, #tpu.memory_space<vmem>>, %arg9: memref<16x128xf32, #tpu.memory_space<vmem>>, %arg10: memref<2x512xf32, #tpu.memory_space<vmem>>, %arg11: memref<2x256xf32, #tpu.memory_space<vmem>>, %arg12: memref<16x512xf32, #tpu.memory_space<vmem>>, %arg13: memref<16x256xf32, #tpu.memory_space<vmem>>) attributes {dimension_semantics = [#tpu.dimension_semantics<arbitrary>, #tpu.dimension_semantics<arbitrary>], iteration_bounds = array<i64: 3, 1>, scalar_prefetch = 0 : i64, scratch_operands = 4 : i64, tpu.core_type = #tpu.core_type<tc>, window_params = [{transform_indices = @transform_0, window_bounds = array<i64: 16, 128>}, {pipeline_mode = #tpu.pipeline_mode<synchronous>, transform_indices = @transform_1, window_bounds = array<i64: 128, 512>}, {pipeline_mode = #tpu.pipeline_mode<synchronous>, transform_indices = @transform_2, window_bounds = array<i64: 3, 512>}, {pipeline_mode = #tpu.pipeline_mode<synchronous>, transform_indices = @transform_3, window_bounds = array<i64: 512, 256>}, {pipeline_mode = #tpu.pipeline_mode<synchronous>, transform_indices = @transform_4, window_bounds = array<i64: 3, 256>}, {pipeline_mode = #tpu.pipeline_mode<synchronous>, transform_indices = @transform_5, window_bounds = array<i64: 256, 128>}, {pipeline_mode = #tpu.pipeline_mode<synchronous>, transform_indices = @transform_6, window_bounds = array<i64: 1, 128>}, {transform_indices = @transform_7, window_bounds = array<i64: 16, 128>}]} {
    %c0 = arith.constant 0 : index
    %c0_0 = arith.constant 0 : index
    %0 = vector.load %arg4[%c0, %c0_0] : memref<3x512xf32, #tpu.memory_space<vmem>>, vector<3x512xf32>
    %1 = vector.extract_strided_slice %0 {offsets = [0, 0], sizes = [1, 512], strides = [1, 1]} : vector<3x512xf32> to vector<1x512xf32>
    %2 = vector.extract_strided_slice %0 {offsets = [1, 0], sizes = [1, 512], strides = [1, 1]} : vector<3x512xf32> to vector<1x512xf32>
    %3 = vector.extract_strided_slice %0 {offsets = [2, 0], sizes = [1, 512], strides = [1, 1]} : vector<3x512xf32> to vector<1x512xf32>
    %c0_1 = arith.constant 0 : index
    %c0_2 = arith.constant 0 : index
    %4 = vector.load %arg6[%c0_1, %c0_2] : memref<3x256xf32, #tpu.memory_space<vmem>>, vector<3x256xf32>
    %5 = vector.extract_strided_slice %4 {offsets = [0, 0], sizes = [1, 256], strides = [1, 1]} : vector<3x256xf32> to vector<1x256xf32>
    %6 = vector.extract_strided_slice %4 {offsets = [1, 0], sizes = [1, 256], strides = [1, 1]} : vector<3x256xf32> to vector<1x256xf32>
    %7 = vector.extract_strided_slice %4 {offsets = [2, 0], sizes = [1, 256], strides = [1, 1]} : vector<3x256xf32> to vector<1x256xf32>
    %c16_i32 = arith.constant 16 : i32
    %8 = arith.muli %arg1, %c16_i32 : i32
    %c0_i32 = arith.constant 0 : i32
    %9 = arith.cmpi eq, %arg0, %c0_i32 : i32
    %c0_i32_3 = arith.constant 0 : i32
    %10 = arith.cmpi eq, %arg1, %c0_i32_3 : i32
    %11 = arith.andi %9, %10 : i1
    %12 = arith.extui %11 : i1 to i32
    %c0_i32_4 = arith.constant 0 : i32
    %13 = arith.cmpi ne, %12, %c0_i32_4 : i32
    scf.if %13 {
      %cst = arith.constant 0.000000e+00 : f32
      %33 = vector.broadcast %cst : f32 to vector<2x512xf32>
      %c0_15 = arith.constant 0 : index
      %c0_16 = arith.constant 0 : index
      %34 = vector.load %arg10[%c0_15, %c0_16] : memref<2x512xf32, #tpu.memory_space<vmem>>, vector<2x512xf32>
      tpu.vector_store %arg10[%c0_15, %c0_16], %33 {strides = array<i32>} : memref<2x512xf32, #tpu.memory_space<vmem>>, vector<2x512xf32>,
      %cst_17 = arith.constant 0.000000e+00 : f32
      %35 = vector.broadcast %cst_17 : f32 to vector<2x256xf32>
      %c0_18 = arith.constant 0 : index
      %c0_19 = arith.constant 0 : index
      %36 = vector.load %arg11[%c0_18, %c0_19] : memref<2x256xf32, #tpu.memory_space<vmem>>, vector<2x256xf32>
      tpu.vector_store %arg11[%c0_18, %c0_19], %35 {strides = array<i32>} : memref<2x256xf32, #tpu.memory_space<vmem>>, vector<2x256xf32>,
    } else {
    }
    %c0_i32_5 = arith.constant 0 : i32
    %14 = arith.cmpi eq, %arg0, %c0_i32_5 : i32
    %15 = arith.extui %14 : i1 to i32
    %c0_i32_6 = arith.constant 0 : i32
    %16 = arith.cmpi ne, %15, %c0_i32_6 : i32
    scf.if %16 {
      %c0_15 = arith.constant 0 : index
      %c0_16 = arith.constant 0 : index
      %33 = vector.load %arg2[%c0_15, %c0_16] : memref<16x128xbf16, #tpu.memory_space<vmem>>, vector<16x128xbf16>
      %c0_17 = arith.constant 0 : index
      %c0_18 = arith.constant 0 : index
      %34 = vector.load %arg3[%c0_17, %c0_18] : memref<128x512xbf16, #tpu.memory_space<vmem>>, vector<128x512xbf16>
      %cst = arith.constant dense<0.000000e+00> : vector<16x512xf32>
      %35 = tpu.matmul %33, %34, %cst {dimension_numbers = #tpu.dot_dimension_numbers<[1], [0], [0], [1], [0, 0, 1, 1], [], []>} : vector<16x128xbf16>, vector<128x512xbf16>, vector<16x512xf32> -> vector<16x512xf32>
      %36 = vector.broadcast %1 : vector<1x512xf32> to vector<16x512xf32>
      %37 = arith.addf %35, %36 : vector<16x512xf32>
      %38 = arith.index_cast %8 : i32 to index
      %c0_19 = arith.constant 0 : index
      %39 = vector.load %arg12[%38, %c0_19] : memref<16x512xf32, #tpu.memory_space<vmem>>, vector<16x512xf32>
      tpu.vector_store %arg12[%38, %c0_19], %37 {strides = array<i32>} : memref<16x512xf32, #tpu.memory_space<vmem>>, vector<16x512xf32>,
      %c0_i32_20 = arith.constant 0 : i32
      %40 = arith.cmpi eq, %arg1, %c0_i32_20 : i32
      %41 = arith.extui %40 : i1 to i32
      %c0_i32_21 = arith.constant 0 : i32
      %42 = arith.cmpi ne, %41, %c0_i32_21 : i32
      scf.if %42 {
        %c16_i32_23 = arith.constant 16 : i32
        %46 = arith.muli %arg1, %c16_i32_23 : i32
        %47 = tpu.iota {dimensions = array<i32: 0>} : vector<16x1xi32>
        %48 = vector.broadcast %46 : i32 to vector<16x1xi32>
        %49 = arith.addi %48, %47 : vector<16x1xi32>
        %c8_i32 = arith.constant 8 : i32
        %50 = vector.broadcast %c8_i32 : i32 to vector<16x1xi32>
        %51 = arith.cmpi slt, %49, %50 : vector<16x1xi32>
        %52 = arith.extui %51 : vector<16x1xi1> to vector<16x1xi32>
        %53 = arith.sitofp %52 : vector<16x1xi32> to vector<16x1xf32>
        %54 = vector.broadcast %53 : vector<16x1xf32> to vector<16x512xf32>
        %55 = arith.mulf %37, %54 : vector<16x512xf32>
        %c0_24 = arith.constant 0 : index
        %c0_25 = arith.constant 0 : index
        %56 = vector.load %arg10[%c0_24, %c0_25] : memref<2x512xf32, #tpu.memory_space<vmem>>, vector<2x512xf32>
        %cst_26 = arith.constant dense<0.000000e+00> : vector<512xf32>
        %57 = vector.multi_reduction <add>, %55, %cst_26 [0] : vector<16x512xf32> to vector<512xf32>
        %58 = vector.shape_cast %57 : vector<512xf32> to vector<1x512xf32>
        %59 = arith.mulf %55, %55 : vector<16x512xf32>
        %cst_27 = arith.constant dense<0.000000e+00> : vector<512xf32>
        %60 = vector.multi_reduction <add>, %59, %cst_27 [0] : vector<16x512xf32> to vector<512xf32>
        %61 = vector.shape_cast %60 : vector<512xf32> to vector<1x512xf32>
        %62 = tpu.concatenate %58, %61 in 0 : vector<1x512xf32>, vector<1x512xf32> -> vector<2x512xf32>
        %63 = arith.addf %56, %62 : vector<2x512xf32>
        %c0_28 = arith.constant 0 : index
        %c0_29 = arith.constant 0 : index
        %64 = vector.load %arg10[%c0_28, %c0_29] : memref<2x512xf32, #tpu.memory_space<vmem>>, vector<2x512xf32>
        tpu.vector_store %arg10[%c0_28, %c0_29], %63 {strides = array<i32>} : memref<2x512xf32, #tpu.memory_space<vmem>>, vector<2x512xf32>,
      } else {
      }
      %true = arith.constant true
      %43 = arith.xori %40, %true : i1
      %44 = arith.extui %43 : i1 to i32
      %c0_i32_22 = arith.constant 0 : i32
      %45 = arith.cmpi ne, %44, %c0_i32_22 : i32
      scf.if %45 {
        %c0_23 = arith.constant 0 : index
        %c0_24 = arith.constant 0 : index
        %46 = vector.load %arg10[%c0_23, %c0_24] : memref<2x512xf32, #tpu.memory_space<vmem>>, vector<2x512xf32>
        %cst_25 = arith.constant dense<0.000000e+00> : vector<512xf32>
        %47 = vector.multi_reduction <add>, %37, %cst_25 [0] : vector<16x512xf32> to vector<512xf32>
        %48 = vector.shape_cast %47 : vector<512xf32> to vector<1x512xf32>
        %49 = arith.mulf %37, %37 : vector<16x512xf32>
        %cst_26 = arith.constant dense<0.000000e+00> : vector<512xf32>
        %50 = vector.multi_reduction <add>, %49, %cst_26 [0] : vector<16x512xf32> to vector<512xf32>
        %51 = vector.shape_cast %50 : vector<512xf32> to vector<1x512xf32>
        %52 = tpu.concatenate %48, %51 in 0 : vector<1x512xf32>, vector<1x512xf32> -> vector<2x512xf32>
        %53 = arith.addf %46, %52 : vector<2x512xf32>
        %c0_27 = arith.constant 0 : index
        %c0_28 = arith.constant 0 : index
        %54 = vector.load %arg10[%c0_27, %c0_28] : memref<2x512xf32, #tpu.memory_space<vmem>>, vector<2x512xf32>
        tpu.vector_store %arg10[%c0_27, %c0_28], %53 {strides = array<i32>} : memref<2x512xf32, #tpu.memory_space<vmem>>, vector<2x512xf32>,
      } else {
      }
    } else {
    }
    %c1_i32 = arith.constant 1 : i32
    %17 = arith.cmpi eq, %arg0, %c1_i32 : i32
    %c0_i32_7 = arith.constant 0 : i32
    %18 = arith.cmpi eq, %arg1, %c0_i32_7 : i32
    %19 = arith.andi %17, %18 : i1
    %20 = arith.extui %19 : i1 to i32
    %c0_i32_8 = arith.constant 0 : i32
    %21 = arith.cmpi ne, %20, %c0_i32_8 : i32
    scf.if %21 {
      %c0_15 = arith.constant 0 : index
      %c0_16 = arith.constant 0 : index
      %33 = vector.load %arg10[%c0_15, %c0_16] : memref<2x512xf32, #tpu.memory_space<vmem>>, vector<1x512xf32>
      %cst = arith.constant 1.250000e-01 : f32
      %34 = vector.broadcast %cst : f32 to vector<1x512xf32>
      %35 = arith.mulf %33, %34 : vector<1x512xf32>
      %c1 = arith.constant 1 : index
      %c0_17 = arith.constant 0 : index
      %36 = vector.load %arg10[%c1, %c0_17] : memref<2x512xf32, #tpu.memory_space<vmem>>, vector<1x512xf32>
      %cst_18 = arith.constant 1.250000e-01 : f32
      %37 = vector.broadcast %cst_18 : f32 to vector<1x512xf32>
      %38 = arith.mulf %36, %37 : vector<1x512xf32>
      %39 = arith.mulf %35, %35 : vector<1x512xf32>
      %40 = arith.subf %38, %39 : vector<1x512xf32>
      %cst_19 = arith.constant 9.99999974E-6 : f32
      %41 = vector.broadcast %cst_19 : f32 to vector<1x512xf32>
      %42 = arith.addf %40, %41 : vector<1x512xf32>
      %43 = math.rsqrt %42 : vector<1x512xf32>
      %44 = arith.mulf %2, %43 : vector<1x512xf32>
      %45 = arith.mulf %35, %44 : vector<1x512xf32>
      %46 = arith.subf %3, %45 : vector<1x512xf32>
      %47 = tpu.concatenate %44, %46 in 0 : vector<1x512xf32>, vector<1x512xf32> -> vector<2x512xf32>
      %c0_20 = arith.constant 0 : index
      %c0_21 = arith.constant 0 : index
      %48 = vector.load %arg10[%c0_20, %c0_21] : memref<2x512xf32, #tpu.memory_space<vmem>>, vector<2x512xf32>
      tpu.vector_store %arg10[%c0_20, %c0_21], %47 {strides = array<i32>} : memref<2x512xf32, #tpu.memory_space<vmem>>, vector<2x512xf32>,
    } else {
    }
    %c1_i32_9 = arith.constant 1 : i32
    %22 = arith.cmpi eq, %arg0, %c1_i32_9 : i32
    %23 = arith.extui %22 : i1 to i32
    %c0_i32_10 = arith.constant 0 : i32
    %24 = arith.cmpi ne, %23, %c0_i32_10 : i32
    scf.if %24 {
      %33 = arith.index_cast %8 : i32 to index
      %c0_15 = arith.constant 0 : index
      %34 = vector.load %arg12[%33, %c0_15] : memref<16x512xf32, #tpu.memory_space<vmem>>, vector<16x512xf32>
      %c0_16 = arith.constant 0 : index
      %c0_17 = arith.constant 0 : index
      %35 = vector.load %arg10[%c0_16, %c0_17] : memref<2x512xf32, #tpu.memory_space<vmem>>, vector<1x512xf32>
      %36 = vector.broadcast %35 : vector<1x512xf32> to vector<16x512xf32>
      %37 = arith.mulf %34, %36 : vector<16x512xf32>
      %c1 = arith.constant 1 : index
      %c0_18 = arith.constant 0 : index
      %38 = vector.load %arg10[%c1, %c0_18] : memref<2x512xf32, #tpu.memory_space<vmem>>, vector<1x512xf32>
      %39 = vector.broadcast %38 : vector<1x512xf32> to vector<16x512xf32>
      %40 = arith.addf %37, %39 : vector<16x512xf32>
      %cst = arith.constant 0.000000e+00 : f32
      %41 = vector.broadcast %cst : f32 to vector<16x512xf32>
      %42 = arith.maximumf %40, %41 : vector<16x512xf32>
      %43 = arith.truncf %42 : vector<16x512xf32> to vector<16x512xbf16>
      %c0_19 = arith.constant 0 : index
      %c0_20 = arith.constant 0 : index
      %44 = vector.load %arg5[%c0_19, %c0_20] : memref<512x256xbf16, #tpu.memory_space<vmem>>, vector<512x256xbf16>
      %cst_21 = arith.constant dense<0.000000e+00> : vector<16x256xf32>
      %45 = tpu.matmul %43, %44, %cst_21 {dimension_numbers = #tpu.dot_dimension_numbers<[1], [0], [0], [1], [0, 0, 1, 1], [], []>} : vector<16x512xbf16>, vector<512x256xbf16>, vector<16x256xf32> -> vector<16x256xf32>
      %46 = vector.broadcast %5 : vector<1x256xf32> to vector<16x256xf32>
      %47 = arith.addf %45, %46 : vector<16x256xf32>
      %48 = arith.index_cast %8 : i32 to index
      %c0_22 = arith.constant 0 : index
      %49 = vector.load %arg13[%48, %c0_22] : memref<16x256xf32, #tpu.memory_space<vmem>>, vector<16x256xf32>
      tpu.vector_store %arg13[%48, %c0_22], %47 {strides = array<i32>} : memref<16x256xf32, #tpu.memory_space<vmem>>, vector<16x256xf32>,
      %c0_i32_23 = arith.constant 0 : i32
      %50 = arith.cmpi eq, %arg1, %c0_i32_23 : i32
      %51 = arith.extui %50 : i1 to i32
      %c0_i32_24 = arith.constant 0 : i32
      %52 = arith.cmpi ne, %51, %c0_i32_24 : i32
      scf.if %52 {
        %c16_i32_26 = arith.constant 16 : i32
        %56 = arith.muli %arg1, %c16_i32_26 : i32
        %57 = tpu.iota {dimensions = array<i32: 0>} : vector<16x1xi32>
        %58 = vector.broadcast %56 : i32 to vector<16x1xi32>
        %59 = arith.addi %58, %57 : vector<16x1xi32>
        %c8_i32 = arith.constant 8 : i32
        %60 = vector.broadcast %c8_i32 : i32 to vector<16x1xi32>
        %61 = arith.cmpi slt, %59, %60 : vector<16x1xi32>
        %62 = arith.extui %61 : vector<16x1xi1> to vector<16x1xi32>
        %63 = arith.sitofp %62 : vector<16x1xi32> to vector<16x1xf32>
        %64 = vector.broadcast %63 : vector<16x1xf32> to vector<16x256xf32>
        %65 = arith.mulf %47, %64 : vector<16x256xf32>
        %c0_27 = arith.constant 0 : index
        %c0_28 = arith.constant 0 : index
        %66 = vector.load %arg11[%c0_27, %c0_28] : memref<2x256xf32, #tpu.memory_space<vmem>>, vector<2x256xf32>
        %cst_29 = arith.constant dense<0.000000e+00> : vector<256xf32>
        %67 = vector.multi_reduction <add>, %65, %cst_29 [0] : vector<16x256xf32> to vector<256xf32>
        %68 = vector.shape_cast %67 : vector<256xf32> to vector<1x256xf32>
        %69 = arith.mulf %65, %65 : vector<16x256xf32>
        %cst_30 = arith.constant dense<0.000000e+00> : vector<256xf32>
        %70 = vector.multi_reduction <add>, %69, %cst_30 [0] : vector<16x256xf32> to vector<256xf32>
        %71 = vector.shape_cast %70 : vector<256xf32> to vector<1x256xf32>
        %72 = tpu.concatenate %68, %71 in 0 : vector<1x256xf32>, vector<1x256xf32> -> vector<2x256xf32>
        %73 = arith.addf %66, %72 : vector<2x256xf32>
        %c0_31 = arith.constant 0 : index
        %c0_32 = arith.constant 0 : index
        %74 = vector.load %arg11[%c0_31, %c0_32] : memref<2x256xf32, #tpu.memory_space<vmem>>, vector<2x256xf32>
        tpu.vector_store %arg11[%c0_31, %c0_32], %73 {strides = array<i32>} : memref<2x256xf32, #tpu.memory_space<vmem>>, vector<2x256xf32>,
      } else {
      }
      %true = arith.constant true
      %53 = arith.xori %50, %true : i1
      %54 = arith.extui %53 : i1 to i32
      %c0_i32_25 = arith.constant 0 : i32
      %55 = arith.cmpi ne, %54, %c0_i32_25 : i32
      scf.if %55 {
        %c0_26 = arith.constant 0 : index
        %c0_27 = arith.constant 0 : index
        %56 = vector.load %arg11[%c0_26, %c0_27] : memref<2x256xf32, #tpu.memory_space<vmem>>, vector<2x256xf32>
        %cst_28 = arith.constant dense<0.000000e+00> : vector<256xf32>
        %57 = vector.multi_reduction <add>, %47, %cst_28 [0] : vector<16x256xf32> to vector<256xf32>
        %58 = vector.shape_cast %57 : vector<256xf32> to vector<1x256xf32>
        %59 = arith.mulf %47, %47 : vector<16x256xf32>
        %cst_29 = arith.constant dense<0.000000e+00> : vector<256xf32>
        %60 = vector.multi_reduction <add>, %59, %cst_29 [0] : vector<16x256xf32> to vector<256xf32>
        %61 = vector.shape_cast %60 : vector<256xf32> to vector<1x256xf32>
        %62 = tpu.concatenate %58, %61 in 0 : vector<1x256xf32>, vector<1x256xf32> -> vector<2x256xf32>
        %63 = arith.addf %56, %62 : vector<2x256xf32>
        %c0_30 = arith.constant 0 : index
        %c0_31 = arith.constant 0 : index
        %64 = vector.load %arg11[%c0_30, %c0_31] : memref<2x256xf32, #tpu.memory_space<vmem>>, vector<2x256xf32>
        tpu.vector_store %arg11[%c0_30, %c0_31], %63 {strides = array<i32>} : memref<2x256xf32, #tpu.memory_space<vmem>>, vector<2x256xf32>,
      } else {
      }
    } else {
    }
    %c2_i32 = arith.constant 2 : i32
    %25 = arith.cmpi eq, %arg0, %c2_i32 : i32
    %c0_i32_11 = arith.constant 0 : i32
    %26 = arith.cmpi eq, %arg1, %c0_i32_11 : i32
    %27 = arith.andi %25, %26 : i1
    %28 = arith.extui %27 : i1 to i32
    %c0_i32_12 = arith.constant 0 : i32
    %29 = arith.cmpi ne, %28, %c0_i32_12 : i32
    scf.if %29 {
      %c0_15 = arith.constant 0 : index
      %c0_16 = arith.constant 0 : index
      %33 = vector.load %arg11[%c0_15, %c0_16] : memref<2x256xf32, #tpu.memory_space<vmem>>, vector<1x256xf32>
      %cst = arith.constant 1.250000e-01 : f32
      %34 = vector.broadcast %cst : f32 to vector<1x256xf32>
      %35 = arith.mulf %33, %34 : vector<1x256xf32>
      %c1 = arith.constant 1 : index
      %c0_17 = arith.constant 0 : index
      %36 = vector.load %arg11[%c1, %c0_17] : memref<2x256xf32, #tpu.memory_space<vmem>>, vector<1x256xf32>
      %cst_18 = arith.constant 1.250000e-01 : f32
      %37 = vector.broadcast %cst_18 : f32 to vector<1x256xf32>
      %38 = arith.mulf %36, %37 : vector<1x256xf32>
      %39 = arith.mulf %35, %35 : vector<1x256xf32>
      %40 = arith.subf %38, %39 : vector<1x256xf32>
      %cst_19 = arith.constant 9.99999974E-6 : f32
      %41 = vector.broadcast %cst_19 : f32 to vector<1x256xf32>
      %42 = arith.addf %40, %41 : vector<1x256xf32>
      %43 = math.rsqrt %42 : vector<1x256xf32>
      %44 = arith.mulf %6, %43 : vector<1x256xf32>
      %45 = arith.mulf %35, %44 : vector<1x256xf32>
      %46 = arith.subf %7, %45 : vector<1x256xf32>
      %47 = tpu.concatenate %44, %46 in 0 : vector<1x256xf32>, vector<1x256xf32> -> vector<2x256xf32>
      %c0_20 = arith.constant 0 : index
      %c0_21 = arith.constant 0 : index
      %48 = vector.load %arg11[%c0_20, %c0_21] : memref<2x256xf32, #tpu.memory_space<vmem>>, vector<2x256xf32>
      tpu.vector_store %arg11[%c0_20, %c0_21], %47 {strides = array<i32>} : memref<2x256xf32, #tpu.memory_space<vmem>>, vector<2x256xf32>,
    } else {
    }
    %c2_i32_13 = arith.constant 2 : i32
    %30 = arith.cmpi eq, %arg0, %c2_i32_13 : i32
    %31 = arith.extui %30 : i1 to i32
    %c0_i32_14 = arith.constant 0 : i32
    %32 = arith.cmpi ne, %31, %c0_i32_14 : i32
    scf.if %32 {
      %33 = arith.index_cast %8 : i32 to index
      %c0_15 = arith.constant 0 : index
      %34 = vector.load %arg13[%33, %c0_15] : memref<16x256xf32, #tpu.memory_space<vmem>>, vector<16x256xf32>
      %c0_16 = arith.constant 0 : index
      %c0_17 = arith.constant 0 : index
      %35 = vector.load %arg11[%c0_16, %c0_17] : memref<2x256xf32, #tpu.memory_space<vmem>>, vector<1x256xf32>
      %36 = vector.broadcast %35 : vector<1x256xf32> to vector<16x256xf32>
      %37 = arith.mulf %34, %36 : vector<16x256xf32>
      %c1 = arith.constant 1 : index
      %c0_18 = arith.constant 0 : index
      %38 = vector.load %arg11[%c1, %c0_18] : memref<2x256xf32, #tpu.memory_space<vmem>>, vector<1x256xf32>
      %39 = vector.broadcast %38 : vector<1x256xf32> to vector<16x256xf32>
      %40 = arith.addf %37, %39 : vector<16x256xf32>
      %cst = arith.constant 0.000000e+00 : f32
      %41 = vector.broadcast %cst : f32 to vector<16x256xf32>
      %42 = arith.maximumf %40, %41 : vector<16x256xf32>
      %43 = arith.truncf %42 : vector<16x256xf32> to vector<16x256xbf16>
      %c0_19 = arith.constant 0 : index
      %c0_20 = arith.constant 0 : index
      %44 = vector.load %arg7[%c0_19, %c0_20] : memref<256x128xbf16, #tpu.memory_space<vmem>>, vector<256x128xbf16>
      %cst_21 = arith.constant dense<0.000000e+00> : vector<16x128xf32>
      %45 = tpu.matmul %43, %44, %cst_21 {dimension_numbers = #tpu.dot_dimension_numbers<[1], [0], [0], [1], [0, 0, 1, 1], [], []>} : vector<16x256xbf16>, vector<256x128xbf16>, vector<16x128xf32> -> vector<16x128xf32>
      %c0_22 = arith.constant 0 : index
      %c0_23 = arith.constant 0 : index
      %46 = vector.load %arg8[%c0_22, %c0_23] : memref<1x128xf32, #tpu.memory_space<vmem>>, vector<1x128xf32>
      %47 = vector.broadcast %46 : vector<1x128xf32> to vector<16x128xf32>
      %48 = arith.addf %45, %47 : vector<16x128xf32>
      %49 = math.tanh %48 : vector<16x128xf32>
      %c0_24 = arith.constant 0 : index
      %c0_25 = arith.constant 0 : index
      %50 = vector.load %arg9[%c0_24, %c0_25] : memref<16x128xf32, #tpu.memory_space<vmem>>, vector<16x128xf32>
      tpu.vector_store %arg9[%c0_24, %c0_25], %49 {strides = array<i32>} : memref<16x128xf32, #tpu.memory_space<vmem>>, vector<16x128xf32>,
    } else {
    }
    return
  }
  func.func @transform_0(%arg0: i32, %arg1: i32) -> (i32, i32) {
    %c0_i32 = arith.constant 0 : i32
    %0 = arith.cmpi eq, %arg0, %c0_i32 : i32
    %c0_i32_0 = arith.constant 0 : i32
    %1 = arith.select %0, %arg1, %c0_i32_0 : i32
    %c0_i32_1 = arith.constant 0 : i32
    %c0_i32_2 = arith.constant 0 : i32
    return %1, %c0_i32_1 : i32, i32
  }
  func.func @transform_1(%arg0: i32, %arg1: i32) -> (i32, i32) {
    %c0_i32 = arith.constant 0 : i32
    %c0_i32_0 = arith.constant 0 : i32
    %c0_i32_1 = arith.constant 0 : i32
    return %c0_i32, %c0_i32_0 : i32, i32
  }
  func.func @transform_2(%arg0: i32, %arg1: i32) -> (i32, i32) {
    %c0_i32 = arith.constant 0 : i32
    %c0_i32_0 = arith.constant 0 : i32
    %c0_i32_1 = arith.constant 0 : i32
    return %c0_i32, %c0_i32_0 : i32, i32
  }
  func.func @transform_3(%arg0: i32, %arg1: i32) -> (i32, i32) {
    %c0_i32 = arith.constant 0 : i32
    %c0_i32_0 = arith.constant 0 : i32
    %c0_i32_1 = arith.constant 0 : i32
    return %c0_i32, %c0_i32_0 : i32, i32
  }
  func.func @transform_4(%arg0: i32, %arg1: i32) -> (i32, i32) {
    %c0_i32 = arith.constant 0 : i32
    %c0_i32_0 = arith.constant 0 : i32
    %c0_i32_1 = arith.constant 0 : i32
    return %c0_i32, %c0_i32_0 : i32, i32
  }
  func.func @transform_5(%arg0: i32, %arg1: i32) -> (i32, i32) {
    %c0_i32 = arith.constant 0 : i32
    %c0_i32_0 = arith.constant 0 : i32
    %c0_i32_1 = arith.constant 0 : i32
    return %c0_i32, %c0_i32_0 : i32, i32
  }
  func.func @transform_6(%arg0: i32, %arg1: i32) -> (i32, i32) {
    %c0_i32 = arith.constant 0 : i32
    %c0_i32_0 = arith.constant 0 : i32
    %c0_i32_1 = arith.constant 0 : i32
    return %c0_i32, %c0_i32_0 : i32, i32
  }
  func.func @transform_7(%arg0: i32, %arg1: i32) -> (i32, i32) {
    %c2_i32 = arith.constant 2 : i32
    %0 = arith.cmpi eq, %arg0, %c2_i32 : i32
    %c0_i32 = arith.constant 0 : i32
    %1 = arith.select %0, %arg1, %c0_i32 : i32
    %c0_i32_0 = arith.constant 0 : i32
    %c0_i32_1 = arith.constant 0 : i32
    return %1, %c0_i32_0 : i32, i32
  }
}

</mosaic_0001>

<llo_original>
// kernel: _forward.1
$region0: #{_forward.1}
  #allocation0 [shape = 'u32[]', space=smem, size = 0x4, offset = 0x4, fixed_abs, tag = 'smem constant byte address 0x4 - core index']
  #allocation1 [shape = 'u32[144,128]{1,0:T(1,128)}', space=vmem, size = 0x12000, scoped, tag = 'internal scratch']
  #allocation2 [shape = 'f32[2,512]{1,0:T(2,128)}', space=vmem, size = 0x1000, scoped, tag = 'scratch operand']
  #allocation3 [shape = 'f32[2,256]{1,0:T(2,128)}', space=vmem, size = 0x800, scoped, tag = 'scratch operand']
  #allocation4 [shape = 'f32[16,512]{1,0:T(8,128)}', space=vmem, size = 0x8000, scoped, tag = 'scratch operand']
  #allocation5 [shape = 'f32[16,256]{1,0:T(8,128)}', space=vmem, size = 0x4000, scoped, tag = 'scratch operand']
  %s0 = inlined_call_operand.vmem [shape: bf16[16,128], index: 0, kind: input, shape index: {}]
  %s1 = inlined_call_operand.hbm [shape: bf16[128,512], index: 1, kind: input, shape index: {}]
  %s2 = inlined_call_operand.vmem [shape: f32[3,512], index: 2, kind: input, shape index: {}]
  %s3 = inlined_call_operand.hbm [shape: bf16[512,256], index: 3, kind: input, shape index: {}]
  %s4 = inlined_call_operand.vmem [shape: f32[3,256], index: 4, kind: input, shape index: {}]
  %s5 = inlined_call_operand.hbm [shape: bf16[256,128], index: 5, kind: input, shape index: {}]
  %s6 = inlined_call_operand.vmem [shape: f32[1,128], index: 6, kind: input, shape index: {}]
  %s7 = inlined_call_operand.vmem [shape: f32[16,128], index: 7, kind: output, shape index: {}]
  %s8 = sld [smem:[#allocation0]]
  $region113: #{_forward.1} parent=0
    _
  %s10 = ssub.s32 1, %s8
  %s11 = scalar_select 0, %s10, %s8
  $region1: #{_forward.1} parent=0
    #allocation6 [shape = 'u8[131072]{0}', space=vmem, size = 0x20000, scoped, tag = 'input window, operand 1, single buffered']
    #allocation7 [shape = 's32[2]{0}', space=sflag, size = 0x8, scoped, tag = 'scoped memory for _forward.1']
    #allocation8 [shape = 'u8[262144]{0}', space=vmem, size = 0x40000, scoped, tag = 'input window, operand 3, single buffered']
    #allocation9 [shape = 's32[1]{0}', space=sflag, size = 0x4, scoped, tag = 'scoped memory for _forward.1']
    #allocation10 [shape = 'u8[65536]{0}', space=vmem, size = 0x10000, scoped, tag = 'input window, operand 5, single buffered']
    %12 = vsyncpa [#allocation7], 0
    %13 = vsyncpa [#allocation9], 0
    loop: start=0, step=1, limit=5
    $region2: #{_forward.1} parent=1 // loop_pre_header
      _
    $region3: #{_forward.1} parent=1 // loop_header
      %s15 = sphi 0, %s19
      %p16 = scmp.ge.s32.totalorder %s15, 5
      %s22 = sphi 0, %s34
      %s23 = sphi 0, %s30
      %s24 = sphi 0, %s22
      %s25 = sphi 0, %s23
      %s26 = sphi 0, %s24
      %s27 = sphi 0, %s25
      %s41 = sphi 0, %s43
      %s44 = sphi 0, %s41
      %s45 = sphi 0, %s44
      %s61 = sphi 0, %s45
      %s65 = sphi 0, %s65
      %s67 = sphi 0, %s65
      %s68 = sphi 0, %s67
      %s82 = sphi 0, %s68
      %s86 = sphi 0, %s86
      %s88 = sphi 0, %s86
      %s89 = sphi 0, %s88
      %s103 = sphi 0, %s89
      %s107 = sphi 0, %s107
      %s109 = sphi 0, %s107
      %s110 = sphi 0, %s109
      %s124 = sphi 0, %s110
      %s128 = sphi 0, %s128
      %s130 = sphi 0, %s128
      %s131 = sphi 0, %s130
      %s145 = sphi 0, %s131
      %s149 = sphi 0, %s149
      %s151 = sphi 0, %s149
      %s152 = sphi 0, %s151
      %s166 = sphi 0, %s152
      %s170 = sphi 0, %s170
      %s172 = sphi 0, %s170
      %s173 = sphi 0, %s172
      %s187 = sphi 0, %s173
      %s197 = sphi 0, %s199
      %s200 = sphi 0, %s197
      %s201 = sphi 0, %s200
      %s217 = sphi 0, %s201
    $region4: #{_forward.1} parent=1 // loop_header_branch
      %18 = sbr.rel (%p16) target = $region8
    $region5: #{_forward.1} parent=1 // loop_body
      %s20 = ssub.s32 %s15, 1
      %s21 = ssub.s32 %s15, 2
      %s28 = sadd.s32 1, %s23
      %p29 = scmp.ge.s32.totalorder %s28, 1
      %s30 = scalar_select %p29, 0, %s28
      %s31 = sadd.s32 1, %s22
      %s32 = scalar_select %p29, %s31, %s22
      %p33 = scmp.ge.s32.totalorder %s32, 3
      %s34 = scalar_select %p33, 0, %s32
      %p35 = scmp.eq.s32.totalorder %s22, 0
      %s36 = scalar_select %p35, %s23, 0
      %p37 = scmp.eq.s32.totalorder %s34, 0
      %s38 = scalar_select %p37, %s30, 0
      %s39 = ssub.s32 %s36, %s38
      %p40 = scmp.eq.s32.totalorder %s39, 0
      %s42 = sadd.s32 %s41, 1
      %s43 = scalar_select %p40, %s41, %s42
      %p46 = pneg %p40
      %p47 = scmp.eq.s32.totalorder %s15, 2
      %p48 = por %p46, %p47
      %p49 = scmp.ne.s32.totalorder %s41, %s44
      %p50 = scmp.eq.s32.totalorder %s15, 0
      %p51 = por %p49, %p50
      %p52 = scmp.ne.s32.totalorder %s41, %s44
      %p53 = scmp.eq.s32.totalorder %s20, 2
      %p54 = por %p52, %p53
      %p55 = scmp.ne.s32.totalorder %s44, %s45
      %p56 = scmp.eq.s32.totalorder %s20, 0
      %p57 = por %p55, %p56
      %p58 = scmp.ne.s32.totalorder %s44, %s45
      %p59 = scmp.eq.s32.totalorder %s21, 2
      %p60 = por %p58, %p59
      %p62 = scmp.ne.s32.totalorder %s45, %s61
      %p63 = scmp.eq.s32.totalorder %s21, 0
      %p64 = por %p62, %p63
      %s66 = sadd.s32 %s65, 1
      %p69 = scmp.eq.s32.totalorder %s15, 2
      %p70 = scmp.ne.s32.totalorder %s65, %s67
      %p71 = scmp.eq.s32.totalorder %s15, 0
      %p72 = por %p70, %p71
      %p73 = scmp.ne.s32.totalorder %s65, %s67
      %p74 = scmp.eq.s32.totalorder %s20, 2
      %p75 = por %p73, %p74
      %p76 = scmp.ne.s32.totalorder %s67, %s68
      %p77 = scmp.eq.s32.totalorder %s20, 0
      %p78 = por %p76, %p77
      %p79 = scmp.ne.s32.totalorder %s67, %s68
      %p80 = scmp.eq.s32.totalorder %s21, 2
      %p81 = por %p79, %p80
      %p83 = scmp.ne.s32.totalorder %s68, %s82
      %p84 = scmp.eq.s32.totalorder %s21, 0
      %p85 = por %p83, %p84
      %s87 = sadd.s32 %s86, 1
      %p90 = scmp.eq.s32.totalorder %s15, 2
      %p91 = scmp.ne.s32.totalorder %s86, %s88
      %p92 = scmp.eq.s32.totalorder %s15, 0
      %p93 = por %p91, %p92
      %p94 = scmp.ne.s32.totalorder %s86, %s88
      %p95 = scmp.eq.s32.totalorder %s20, 2
      %p96 = por %p94, %p95
      %p97 = scmp.ne.s32.totalorder %s88, %s89
      %p98 = scmp.eq.s32.totalorder %s20, 0
      %p99 = por %p97, %p98
      %p100 = scmp.ne.s32.totalorder %s88, %s89
      %p101 = scmp.eq.s32.totalorder %s21, 2
      %p102 = por %p100, %p101
      %p104 = scmp.ne.s32.totalorder %s89, %s103
      %p105 = scmp.eq.s32.totalorder %s21, 0
      %p106 = por %p104, %p105
      %s108 = sadd.s32 %s107, 1
      %p111 = scmp.eq.s32.totalorder %s15, 2
      %p112 = scmp.ne.s32.totalorder %s107, %s109
      %p113 = scmp.eq.s32.totalorder %s15, 0
      %p114 = por %p112, %p113
      %p115 = scmp.ne.s32.totalorder %s107, %s109
      %p116 = scmp.eq.s32.totalorder %s20, 2
      %p117 = por %p115, %p116
      %p118 = scmp.ne.s32.totalorder %s109, %s110
      %p119 = scmp.eq.s32.totalorder %s20, 0
      %p120 = por %p118, %p119
      %p121 = scmp.ne.s32.totalorder %s109, %s110
      %p122 = scmp.eq.s32.totalorder %s21, 2
      %p123 = por %p121, %p122
      %p125 = scmp.ne.s32.totalorder %s110, %s124
      %p126 = scmp.eq.s32.totalorder %s21, 0
      %p127 = por %p125, %p126
      %s129 = sadd.s32 %s128, 1
      %p132 = scmp.eq.s32.totalorder %s15, 2
      %p133 = scmp.ne.s32.totalorder %s128, %s130
      %p134 = scmp.eq.s32.totalorder %s15, 0
      %p135 = por %p133, %p134
      %p136 = scmp.ne.s32.totalorder %s128, %s130
      %p137 = scmp.eq.s32.totalorder %s20, 2
      %p138 = por %p136, %p137
      %p139 = scmp.ne.s32.totalorder %s130, %s131
      %p140 = scmp.eq.s32.totalorder %s20, 0
      %p141 = por %p139, %p140
      %p142 = scmp.ne.s32.totalorder %s130, %s131
      %p143 = scmp.eq.s32.totalorder %s21, 2
      %p144 = por %p142, %p143
      %p146 = scmp.ne.s32.totalorder %s131, %s145
      %p147 = scmp.eq.s32.totalorder %s21, 0
      %p148 = por %p146, %p147
      %s150 = sadd.s32 %s149, 1
      %p153 = scmp.eq.s32.totalorder %s15, 2
      %p154 = scmp.ne.s32.totalorder %s149, %s151
      %p155 = scmp.eq.s32.totalorder %s15, 0
      %p156 = por %p154, %p155
      %p157 = scmp.ne.s32.totalorder %s149, %s151
      %p158 = scmp.eq.s32.totalorder %s20, 2
      %p159 = por %p157, %p158
      %p160 = scmp.ne.s32.totalorder %s151, %s152
      %p161 = scmp.eq.s32.totalorder %s20, 0
      %p162 = por %p160, %p161
      %p163 = scmp.ne.s32.totalorder %s151, %s152
      %p164 = scmp.eq.s32.totalorder %s21, 2
      %p165 = por %p163, %p164
      %p167 = scmp.ne.s32.totalorder %s152, %s166
      %p168 = scmp.eq.s32.totalorder %s21, 0
      %p169 = por %p167, %p168
      %s171 = sadd.s32 %s170, 1
      %p174 = scmp.eq.s32.totalorder %s15, 2
      %p175 = scmp.ne.s32.totalorder %s170, %s172
      %p176 = scmp.eq.s32.totalorder %s15, 0
      %p177 = por %p175, %p176
      %p178 = scmp.ne.s32.totalorder %s170, %s172
      %p179 = scmp.eq.s32.totalorder %s20, 2
      %p180 = por %p178, %p179
      %p181 = scmp.ne.s32.totalorder %s172, %s173
      %p182 = scmp.eq.s32.totalorder %s20, 0
      %p183 = por %p181, %p182
      %p184 = scmp.ne.s32.totalorder %s172, %s173
      %p185 = scmp.eq.s32.totalorder %s21, 2
      %p186 = por %p184, %p185
      %p188 = scmp.ne.s32.totalorder %s173, %s187
      %p189 = scmp.eq.s32.totalorder %s21, 0
      %p190 = por %p188, %p189
      %p191 = scmp.eq.s32.totalorder %s22, 2
      %s192 = scalar_select %p191, %s23, 0
      %p193 = scmp.eq.s32.totalorder %s34, 2
      %s194 = scalar_select %p193, %s30, 0
      %s195 = ssub.s32 %s192, %s194
      %p196 = scmp.eq.s32.totalorder %s195, 0
      %s198 = sadd.s32 %s197, 1
      %s199 = scalar_select %p196, %s197, %s198
      %p202 = pneg %p196
      %p203 = scmp.eq.s32.totalorder %s15, 2
      %p204 = por %p202, %p203
      %p205 = scmp.ne.s32.totalorder %s197, %s200
      %p206 = scmp.eq.s32.totalorder %s15, 0
      %p207 = por %p205, %p206
      %p208 = scmp.ne.s32.totalorder %s197, %s200
      %p209 = scmp.eq.s32.totalorder %s20, 2
      %p210 = por %p208, %p209
      %p211 = scmp.ne.s32.totalorder %s200, %s201
      %p212 = scmp.eq.s32.totalorder %s20, 0
      %p213 = por %p211, %p212
      %p214 = scmp.ne.s32.totalorder %s200, %s201
      %p215 = scmp.eq.s32.totalorder %s21, 2
      %p216 = por %p214, %p215
      %p218 = scmp.ne.s32.totalorder %s201, %s217
      %p219 = scmp.eq.s32.totalorder %s21, 0
      %p220 = por %p218, %p219
      %p221 = scmp.le.s32.totalorder 1, %s15
      %p222 = scmp.lt.s32.totalorder %s15, 4
      %p223 = pnand %p221, %p222
      %p224 = pneg %p223
      // Predicated region
      $region9: #{_forward.1} parent=5 // pred_check
        _
      $region10: #{_forward.1} parent=5 // pred_check_branch
        %226 = sbr.rel (%p223) target = $region12
      $region11: #{_forward.1} parent=5 // pred_region
        %s227 = ssub.s32 %s15, 1
        // Predicated region
        $region13: #{_forward.1} parent=11 // pred_check
          %p228 = pneg %p78
        $region14: #{_forward.1} parent=11 // pred_check_branch
          %230 = sbr.rel (%p228) target = $region16
        $region15: #{_forward.1} parent=11 // pred_region
          %s232 = ssub.s32 4096, 4096
          %233 = vsyncadd [#allocation7], %s232
          %s234 = sshll.u32 [#allocation6], 4
          %s235 = int_to_ptr.vmem [resolvable:$true] %s234
          %240 = dma.hbm_to_vmem [thread:$0]  %s1, 4096, %s235, [#allocation7], 256, 256, 16
        $region16: #{_forward.1} parent=11 // pred_fallthru
          _
        // Predicated region
        $region17: #{_forward.1} parent=11 // pred_check
          %p241 = pneg %p99
        $region18: #{_forward.1} parent=11 // pred_check_branch
          %243 = sbr.rel (%p241) target = $region20
        $region19: #{_forward.1} parent=11 // pred_region
          _
        $region20: #{_forward.1} parent=11 // pred_fallthru
          _
        // Predicated region
        $region21: #{_forward.1} parent=11 // pred_check
          %p244 = pneg %p120
        $region22: #{_forward.1} parent=11 // pred_check_branch
          %246 = sbr.rel (%p244) target = $region24
        $region23: #{_forward.1} parent=11 // pred_region
          %s248 = ssub.s32 8192, 8192
          %249 = vsyncadd [#allocation9], %s248
          %s250 = sshll.u32 [#allocation8], 4
          %s251 = int_to_ptr.vmem [resolvable:$true] %s250
          %256 = dma.hbm_to_vmem [thread:$0]  %s3, 8192, %s251, [#allocation9], 128, 128, 8
        $region24: #{_forward.1} parent=11 // pred_fallthru
          _
        // Predicated region
        $region25: #{_forward.1} parent=11 // pred_check
          %p257 = pneg %p141
        $region26: #{_forward.1} parent=11 // pred_check_branch
          %259 = sbr.rel (%p257) target = $region28
        $region27: #{_forward.1} parent=11 // pred_region
          _
        $region28: #{_forward.1} parent=11 // pred_fallthru
          _
        // Predicated region
        $region29: #{_forward.1} parent=11 // pred_check
          %p260 = pneg %p162
        $region30: #{_forward.1} parent=11 // pred_check_branch
          %262 = sbr.rel (%p260) target = $region32
        $region31: #{_forward.1} parent=11 // pred_region
          %s264 = ssub.s32 2048, 2048
          %265 = vsyncadd [#allocation9], %s264
          %s266 = sshll.u32 [#allocation10], 4
          %s267 = int_to_ptr.vmem [resolvable:$true] %s266
          %272 = dma.hbm_to_vmem [thread:$0]  %s5, 2048, %s267, [#allocation9], 64, 64, 4
        $region32: #{_forward.1} parent=11 // pred_fallthru
          _
        // Predicated region
        $region33: #{_forward.1} parent=11 // pred_check
          %p273 = pneg %p183
        $region34: #{_forward.1} parent=11 // pred_check_branch
          %275 = sbr.rel (%p273) target = $region36
        $region35: #{_forward.1} parent=11 // pred_region
          _
        $region36: #{_forward.1} parent=11 // pred_fallthru
          _
      $region12: #{_forward.1} parent=5 // pred_fallthru
        _
      %p276 = scmp.lt.s32.totalorder %s15, 3
      // Predicated region
      $region37: #{_forward.1} parent=5 // pred_check
        %p277 = pneg %p276
      $region38: #{_forward.1} parent=5 // pred_check_branch
        %279 = sbr.rel (%p277) target = $region40
      $region39: #{_forward.1} parent=5 // pred_region
        // Predicated region
        $region41: #{_forward.1} parent=39 // pred_check
          %p280 = pneg %p51
        $region42: #{_forward.1} parent=39 // pred_check_branch
          %282 = sbr.rel (%p280) target = $region44
        $region43: #{_forward.1} parent=39 // pred_region
          %p283 = scmp.eq.s32.totalorder %s22, 0
          %s284 = scalar_select %p283, %s23, 0
          %s285 = smul.u32 2, %s284
          %p286 = scmp.lt.s32.totalorder %s285, 1
          %s287 = scalar_select %p286, %s285, 1
          %s288 = smul.addr %s287, 4
          %s289 = scalar_lea.vmem %s0, %s288
          %p290 = scmp.eq.s32.totalorder %s22, 0
          %s291 = scalar_select %p290, %s23, 0
          %s292 = smul.u32 2, %s291
        $region44: #{_forward.1} parent=39 // pred_fallthru
          _
      $region40: #{_forward.1} parent=5 // pred_fallthru
        _
      %p293 = scmp.le.s32.totalorder 1, %s15
      %p294 = scmp.lt.s32.totalorder %s15, 4
      %p295 = pnand %p293, %p294
      %p296 = pneg %p295
      // Predicated region
      $region45: #{_forward.1} parent=5 // pred_check
        _
      $region46: #{_forward.1} parent=5 // pred_check_branch
        %298 = sbr.rel (%p295) target = $region48
      $region47: #{_forward.1} parent=5 // pred_region
        %s299 = ssub.s32 %s15, 1
        // Predicated region
        $region49: #{_forward.1} parent=47 // pred_check
          %p300 = pneg %p78
        $region50: #{_forward.1} parent=47 // pred_check_branch
          %302 = sbr.rel (%p300) target = $region52
        $region51: #{_forward.1} parent=47 // pred_region
          %303 = dma.done [#allocation7], 4096
        $region52: #{_forward.1} parent=47 // pred_fallthru
          _
        // Predicated region
        $region53: #{_forward.1} parent=47 // pred_check
          %p304 = pneg %p120
        $region54: #{_forward.1} parent=47 // pred_check_branch
          %306 = sbr.rel (%p304) target = $region56
        $region55: #{_forward.1} parent=47 // pred_region
          %307 = dma.done [#allocation9], 8192
        $region56: #{_forward.1} parent=47 // pred_fallthru
          _
        // Predicated region
        $region57: #{_forward.1} parent=47 // pred_check
          %p308 = pneg %p162
        $region58: #{_forward.1} parent=47 // pred_check_branch
          %310 = sbr.rel (%p308) target = $region60
        $region59: #{_forward.1} parent=47 // pred_region
          %311 = dma.done [#allocation9], 2048
        $region60: #{_forward.1} parent=47 // pred_fallthru
          _
        %p312 = scmp.eq.s32.totalorder %s24, 0
        %s313 = scalar_select %p312, %s25, 0
        %s314 = smul.u32 2, %s313
        %p315 = scmp.lt.s32.totalorder %s314, 1
        %s316 = scalar_select %p315, %s314, 1
        %s317 = smul.addr %s316, 4
        %s318 = scalar_lea.vmem %s0, %s317
        %p319 = pneg %p57
        %p320 = pneg %p54
        %p321 = pneg %p78
        %p322 = pneg %p75
        %p323 = pneg %p99
        %p324 = pneg %p96
        %p325 = pneg %p120
        %p326 = pneg %p117
        %p327 = pneg %p141
        %p328 = pneg %p138
        %p329 = pneg %p162
        %p330 = pneg %p159
        %p331 = pneg %p183
        %p332 = pneg %p180
        %p333 = pneg %p213
        %p334 = pneg %p210
        %p335 = scmp.eq.s32.totalorder %s24, 2
        %s336 = scalar_select %p335, %s25, 0
        %s337 = smul.u32 2, %s336
        %p338 = scmp.lt.s32.totalorder %s337, 1
        %s339 = scalar_select %p338, %s337, 1
        %s340 = smul.addr %s339, 8
        %s341 = scalar_lea.vmem %s7, %s340
        %p342 = scmp.eq.s32.totalorder %s24, 0
        %s343 = scalar_select %p342, %s25, 0
        %s344 = smul.u32 2, %s343
        %p345 = scmp.lt.s32.totalorder %s344, 1
        %s346 = scalar_select %p345, %s344, 1
        %s347 = smul.addr %s346, 4
        %s348 = scalar_lea.vmem %s0, %s347
        %p349 = scmp.eq.s32.totalorder %s24, 0
        %s350 = scalar_select %p349, %s25, 0
        %s351 = smul.u32 2, %s350
        %p352 = scmp.eq.s32.totalorder %s24, 2
        %s353 = scalar_select %p352, %s25, 0
        %s354 = smul.u32 2, %s353
        %p355 = scmp.lt.s32.totalorder %s354, 1
        %s356 = scalar_select %p355, %s354, 1
        %s357 = smul.addr %s356, 8
        %s358 = scalar_lea.vmem %s7, %s357
        %p359 = scmp.eq.s32.totalorder %s24, 2
        %s360 = scalar_select %p359, %s25, 0
        %s361 = smul.u32 2, %s360
        %v363 = vld [vmem:[%s2] sm:$0x77]
        %v364 = vld [vmem:[%s2 + $0x8] sm:$0x77]
        %v365 = vld [vmem:[%s4] sm:$0x77]
        %s366 = smul.u32 %s25, 16
        %p367 = scmp.eq.s32.totalorder %s24, 0
        %p368 = scmp.eq.s32.totalorder %s25, 0
        %p369 = pnand %p367, %p368
        %p370 = pneg %p369
        // Predicated region
        $region61: #{_forward.1} parent=47 // pred_check
          _
        $region62: #{_forward.1} parent=47 // pred_check_branch
          %372 = sbr.rel (%p369) target = $region64
        $region63: #{_forward.1} parent=47 // pred_region
          %373 = vst [vmem:[#allocation2] sm:$0xff] 0.0
          %374 = vst [vmem:[#allocation3] sm:$0xf] 0.0
        $region64: #{_forward.1} parent=47 // pred_fallthru
          _
        // Predicated region
        $region65: #{_forward.1} parent=47 // pred_check
          %p375 = pneg %p367
        $region66: #{_forward.1} parent=47 // pred_check_branch
          %377 = sbr.rel (%p375) target = $region68
        $region67: #{_forward.1} parent=47 // pred_region
          %v378 = vld [vmem:[%s348] sm:$0xf]
          %v379 = vld [vmem:[%s348 + $0x4] sm:$0xf]
          %v380 = vld [vmem:[#allocation6] sm:$0xff]
          %v381 = vld [vmem:[#allocation6 + $0x8] sm:$0xff]
          %v382 = vld [vmem:[#allocation6 + $0x10] sm:$0xff]
          %v383 = vld [vmem:[#allocation6 + $0x18] sm:$0xff]
          %v384 = vld [vmem:[#allocation6 + $0x20] sm:$0xff]
          %v385 = vld [vmem:[#allocation6 + $0x28] sm:$0xff]
          %v386 = vld [vmem:[#allocation6 + $0x30] sm:$0xff]
          %v387 = vld [vmem:[#allocation6 + $0x38] sm:$0xff]
          %v388 = vld [vmem:[#allocation6 + $0x40] sm:$0xff]
          %v389 = vld [vmem:[#allocation6 + $0x48] sm:$0xff]
          %v390 = vld [vmem:[#allocation6 + $0x50] sm:$0xff]
          %v391 = vld [vmem:[#allocation6 + $0x58] sm:$0xff]
          %v392 = vld [vmem:[#allocation6 + $0x60] sm:$0xff]
          %v393 = vld [vmem:[#allocation6 + $0x68] sm:$0xff]
          %v394 = vld [vmem:[#allocation6 + $0x70] sm:$0xff]
          %v395 = vld [vmem:[#allocation6 + $0x78] sm:$0xff]
          %v396 = vld [vmem:[#allocation6 + $0x80] sm:$0xff]
          %v397 = vld [vmem:[#allocation6 + $0x88] sm:$0xff]
          %v398 = vld [vmem:[#allocation6 + $0x90] sm:$0xff]
          %v399 = vld [vmem:[#allocation6 + $0x98] sm:$0xff]
          %v400 = vld [vmem:[#allocation6 + $0xa0] sm:$0xff]
          %v401 = vld [vmem:[#allocation6 + $0xa8] sm:$0xff]
          %v402 = vld [vmem:[#allocation6 + $0xb0] sm:$0xff]
          %v403 = vld [vmem:[#allocation6 + $0xb8] sm:$0xff]
          %v404 = vld [vmem:[#allocation6 + $0xc0] sm:$0xff]
          %v405 = vld [vmem:[#allocation6 + $0xc8] sm:$0xff]
          %v406 = vld [vmem:[#allocation6 + $0xd0] sm:$0xff]
          %v407 = vld [vmem:[#allocation6 + $0xd8] sm:$0xff]
          %v408 = vld [vmem:[#allocation6 + $0xe0] sm:$0xff]
          %v409 = vld [vmem:[#allocation6 + $0xe8] sm:$0xff]
          %v410 = vld [vmem:[#allocation6 + $0xf0] sm:$0xff]
          %v411 = vld [vmem:[#allocation6 + $0xf8] sm:$0xff]
          %v414 = vlaneseq
          %v415 = vshrl.u32 %v414, 7
          %v416 = vsub.s32 0, %v415
          %v417 = vrot.slane %v363, %v416
          %v418 = vlaneseq
          %v419 = vshrl.u32 %v418, 7
          %v420 = vsub.s32 4, %v419
          %v421 = vrot.slane %v363, %v420
          %v422 = vlaneseq
          %v423 = vshrl.u32 %v422, 7
          %v424 = vsub.s32 0, %v423
          %v425 = vrot.slane %v364, %v424
          %v426 = vlaneseq
          %v427 = vshrl.u32 %v426, 7
          %v428 = vsub.s32 4, %v427
          %v429 = vrot.slane %v364, %v428
          %v434 = vlaneseq
          %v435 = vshrl.u32 %v434, 7
          %v436 = vsub.s32 0, %v435
          %v437 = vrot.slane %v417, %v436
          %v438 = vlaneseq
          %v439 = vshrl.u32 %v438, 7
          %v440 = vsub.s32 0, %v439
          %v441 = vrot.slane %v421, %v440
          %v442 = vlaneseq
          %v443 = vshrl.u32 %v442, 7
          %v444 = vsub.s32 0, %v443
          %v445 = vrot.slane %v425, %v444
          %v446 = vlaneseq
          %v447 = vshrl.u32 %v446, 7
          %v448 = vsub.s32 0, %v447
          %v449 = vrot.slane %v429, %v448
          %v452 = vunpack.c.l.b16 %v378
          %v453 = vunpack.c.l.b16 %v379
          %v454 = vpack.c.b16 %v453, %v452
          %v488 = vunpack.c.l.b16 %v380
          %v489 = vunpack.c.h.b16 %v380
          %v490 = vunpack.c.l.b16 %v381
          %v491 = vunpack.c.h.b16 %v381
          %v492 = vunpack.c.l.b16 %v382
          %v493 = vunpack.c.h.b16 %v382
          %v494 = vunpack.c.l.b16 %v383
          %v495 = vunpack.c.h.b16 %v383
          %v496 = vunpack.c.l.b16 %v384
          %v497 = vunpack.c.h.b16 %v384
          %v498 = vunpack.c.l.b16 %v385
          %v499 = vunpack.c.h.b16 %v385
          %v500 = vunpack.c.l.b16 %v386
          %v501 = vunpack.c.h.b16 %v386
          %v502 = vunpack.c.l.b16 %v387
          %v503 = vunpack.c.h.b16 %v387
          %v504 = vunpack.c.l.b16 %v388
          %v505 = vunpack.c.h.b16 %v388
          %v506 = vunpack.c.l.b16 %v389
          %v507 = vunpack.c.h.b16 %v389
          %v508 = vunpack.c.l.b16 %v390
          %v509 = vunpack.c.h.b16 %v390
          %v510 = vunpack.c.l.b16 %v391
          %v511 = vunpack.c.h.b16 %v391
          %v512 = vunpack.c.l.b16 %v392
          %v513 = vunpack.c.h.b16 %v392
          %v514 = vunpack.c.l.b16 %v393
          %v515 = vunpack.c.h.b16 %v393
          %v516 = vunpack.c.l.b16 %v394
          %v517 = vunpack.c.h.b16 %v394
          %v518 = vunpack.c.l.b16 %v395
          %v519 = vunpack.c.h.b16 %v395
          %v520 = vunpack.c.l.b16 %v396
          %v521 = vunpack.c.h.b16 %v396
          %v522 = vunpack.c.l.b16 %v397
          %v523 = vunpack.c.h.b16 %v397
          %v524 = vunpack.c.l.b16 %v398
          %v525 = vunpack.c.h.b16 %v398
          %v526 = vunpack.c.l.b16 %v399
          %v527 = vunpack.c.h.b16 %v399
          %v528 = vunpack.c.l.b16 %v400
          %v529 = vunpack.c.h.b16 %v400
          %v530 = vunpack.c.l.b16 %v401
          %v531 = vunpack.c.h.b16 %v401
          %v532 = vunpack.c.l.b16 %v402
          %v533 = vunpack.c.h.b16 %v402
          %v534 = vunpack.c.l.b16 %v403
          %v535 = vunpack.c.h.b16 %v403
          %v536 = vunpack.c.l.b16 %v404
          %v537 = vunpack.c.h.b16 %v404
          %v538 = vunpack.c.l.b16 %v405
          %v539 = vunpack.c.h.b16 %v405
          %v540 = vunpack.c.l.b16 %v406
          %v541 = vunpack.c.h.b16 %v406
          %v542 = vunpack.c.l.b16 %v407
          %v543 = vunpack.c.h.b16 %v407
          %v544 = vunpack.c.l.b16 %v408
          %v545 = vunpack.c.h.b16 %v408
          %v546 = vunpack.c.l.b16 %v409
          %v547 = vunpack.c.h.b16 %v409
          %v548 = vunpack.c.l.b16 %v410
          %v549 = vunpack.c.h.b16 %v410
          %v550 = vunpack.c.l.b16 %v411
          %v551 = vunpack.c.h.b16 %v411
          %v552 = vpack.c.b16 %v492, %v488
          %v553 = vpack.c.b16 %v493, %v489
          %v554 = vpack.c.b16 %v494, %v490
          %v555 = vpack.c.b16 %v495, %v491
          %v556 = vpack.c.b16 %v500, %v496
          %v557 = vpack.c.b16 %v501, %v497
          %v558 = vpack.c.b16 %v502, %v498
          %v559 = vpack.c.b16 %v503, %v499
          %v560 = vpack.c.b16 %v508, %v504
          %v561 = vpack.c.b16 %v509, %v505
          %v562 = vpack.c.b16 %v510, %v506
          %v563 = vpack.c.b16 %v511, %v507
          %v564 = vpack.c.b16 %v516, %v512
          %v565 = vpack.c.b16 %v517, %v513
          %v566 = vpack.c.b16 %v518, %v514
          %v567 = vpack.c.b16 %v519, %v515
          %v568 = vpack.c.b16 %v524, %v520
          %v569 = vpack.c.b16 %v525, %v521
          %v570 = vpack.c.b16 %v526, %v522
          %v571 = vpack.c.b16 %v527, %v523
          %v572 = vpack.c.b16 %v532, %v528
          %v573 = vpack.c.b16 %v533, %v529
          %v574 = vpack.c.b16 %v534, %v530
          %v575 = vpack.c.b16 %v535, %v531
          %v576 = vpack.c.b16 %v540, %v536
          %v577 = vpack.c.b16 %v541, %v537
          %v578 = vpack.c.b16 %v542, %v538
          %v579 = vpack.c.b16 %v543, %v539
          %v580 = vpack.c.b16 %v548, %v544
          %v581 = vpack.c.b16 %v549, %v545
          %v582 = vpack.c.b16 %v550, %v546
          %v583 = vpack.c.b16 %v551, %v547
          %616 = vmatprep.subr.bf16.mxu0 %v553
          %617 = vmatpush1.bf16.msra.mxu0 %v552
          %618 = vmatprep.subr.bf16.mxu0 %v557
          %619 = vmatpush1.bf16.msra.mxu0 %v556
          %620 = vmatprep.subr.bf16.mxu0 %v561
          %621 = vmatpush1.bf16.msra.mxu0 %v560
          %622 = vmatprep.subr.bf16.mxu0 %v565
          %623 = vmatpush1.bf16.msra.mxu0 %v564
          %624 = vmatprep.subr.bf16.mxu0 %v569
          %625 = vmatpush1.bf16.msra.mxu0 %v568
          %626 = vmatprep.subr.bf16.mxu0 %v573
          %627 = vmatpush1.bf16.msra.mxu0 %v572
          %628 = vmatprep.subr.bf16.mxu0 %v577
          %629 = vmatpush1.bf16.msra.mxu0 %v576
          %630 = vmatprep.subr.bf16.mxu0 %v581
          %631 = vmatpush1.bf16.msra.mxu0 %v580
          %632 = vmatprep.subr.bf16.mxu0 0
          %633 = vmatpush1.bf16.msra.mxu0 0
          %634 = vmatprep.subr.bf16.mxu0 0
          %635 = vmatpush1.bf16.msra.mxu0 0
          %636 = vmatprep.subr.bf16.mxu0 0
          %637 = vmatpush1.bf16.msra.mxu0 0
          %638 = vmatprep.subr.bf16.mxu0 0
          %639 = vmatpush1.bf16.msra.mxu0 0
          %640 = vmatprep.subr.bf16.mxu0 0
          %641 = vmatpush1.bf16.msra.mxu0 0
          %642 = vmatprep.subr.bf16.mxu0 0
          %643 = vmatpush1.bf16.msra.mxu0 0
          %644 = vmatprep.subr.bf16.mxu0 0
          %645 = vmatpush1.bf16.msra.mxu0 0
          %646 = vmatprep.subr.bf16.mxu0 0
          %647 = vmatpush1.bf16.msra.mxu0 0
          %648 = vmatprep.mubr.bf16.mxu0 0
          %649 = vmatmul.mubr.bf16.gmra.mrb[0].mxu0 %v454
          %v650 = vpop.f32.mrb[0].mxu0
          %v651 = vadd.f32 %v437, %v650
          %v652 = vpop.f32.mrb[0].mxu0
          %v653 = vadd.f32 %v441, %v652
          %v654 = vpop.f32.mrb[0].mxu0
          %v655 = vadd.f32 %v437, %v654
          %v656 = vpop.f32.mrb[0].mxu0
          %v657 = vadd.f32 %v441, %v656
          %658 = vdwg.mxu0
          %659 = vmatprep.subr.bf16.mxu0 %v555
          %660 = vmatpush1.bf16.msra.mxu0 %v554
          %661 = vmatprep.subr.bf16.mxu0 %v559
          %662 = vmatpush1.bf16.msra.mxu0 %v558
          %663 = vmatprep.subr.bf16.mxu0 %v563
          %664 = vmatpush1.bf16.msra.mxu0 %v562
          %665 = vmatprep.subr.bf16.mxu0 %v567
          %666 = vmatpush1.bf16.msra.mxu0 %v566
          %667 = vmatprep.subr.bf16.mxu0 %v571
          %668 = vmatpush1.bf16.msra.mxu0 %v570
          %669 = vmatprep.subr.bf16.mxu0 %v575
          %670 = vmatpush1.bf16.msra.mxu0 %v574
          %671 = vmatprep.subr.bf16.mxu0 %v579
          %672 = vmatpush1.bf16.msra.mxu0 %v578
          %673 = vmatprep.subr.bf16.mxu0 %v583
          %674 = vmatpush1.bf16.msra.mxu0 %v582
          %675 = vmatprep.subr.bf16.mxu0 0
          %676 = vmatpush1.bf16.msra.mxu0 0
          %677 = vmatprep.subr.bf16.mxu0 0
          %678 = vmatpush1.bf16.msra.mxu0 0
          %679 = vmatprep.subr.bf16.mxu0 0
          %680 = vmatpush1.bf16.msra.mxu0 0
          %681 = vmatprep.subr.bf16.mxu0 0
          %682 = vmatpush1.bf16.msra.mxu0 0
          %683 = vmatprep.subr.bf16.mxu0 0
          %684 = vmatpush1.bf16.msra.mxu0 0
          %685 = vmatprep.subr.bf16.mxu0 0
          %686 = vmatpush1.bf16.msra.mxu0 0
          %687 = vmatprep.subr.bf16.mxu0 0
          %688 = vmatpush1.bf16.msra.mxu0 0
          %689 = vmatprep.subr.bf16.mxu0 0
          %690 = vmatpush1.bf16.msra.mxu0 0
          %691 = vmatprep.mubr.bf16.mxu0 0
          %692 = vmatmul.mubr.bf16.gmra.mrb[0].mxu0 %v454
          %v693 = vpop.f32.mrb[0].mxu0
          %v694 = vadd.f32 %v445, %v693
          %v695 = vpop.f32.mrb[0].mxu0
          %v696 = vadd.f32 %v449, %v695
          %v697 = vpop.f32.mrb[0].mxu0
          %v698 = vadd.f32 %v445, %v697
          %v699 = vpop.f32.mrb[0].mxu0
          %v700 = vadd.f32 %v449, %v699
          %701 = vdwg.mxu0
          %s702 = sshra.s32 %s366, 3
          %s703 = sand.u32 %s366, 7
          %s704 = smul.u32 %s702, 4
          %s705 = smul.addr %s704, 8
          %s706 = scalar_lea.vmem [#allocation4], %s705
          %707 = vst [vmem:[%s706] sm:$0xff] %v651
          %708 = vst [vmem:[%s706 + $0x8] sm:$0xff] %v653
          %709 = vst [vmem:[%s706 + $0x10] sm:$0xff] %v694
          %710 = vst [vmem:[%s706 + $0x18] sm:$0xff] %v696
          %711 = vst [vmem:[%s706 + $0x20] sm:$0xff] %v655
          %712 = vst [vmem:[%s706 + $0x28] sm:$0xff] %v657
          %713 = vst [vmem:[%s706 + $0x30] sm:$0xff] %v698
          %714 = vst [vmem:[%s706 + $0x38] sm:$0xff] %v700
          // Predicated region
          $region69: #{_forward.1} parent=67 // pred_check
            %p715 = pneg %p368
          $region70: #{_forward.1} parent=67 // pred_check_branch
            %717 = sbr.rel (%p715) target = $region72
          $region71: #{_forward.1} parent=67 // pred_region
            %v718 = vlaneseq
            %v719 = vshrl.u32 %v718, 7
            %v720 = vadd.s32 %v719, 8
            %v721 = vstv %s366
            %v722 = vadd.s32 %v721, %v719
            %v723 = vadd.s32 %v721, %v720
            %vm724 = vcmp.lt.s32.totalorder %v722, 8
            %vm725 = vcmp.lt.s32.totalorder %v723, 8
            %v726 = vsel %vm724, 1, 0
            %v727 = vsel %vm725, 1, 0
            %v728 = vcvt.s32.f32 %v726
            %v729 = vcvt.s32.f32 %v727
            %v730 = vmul.f32 %v651, %v728
            %v731 = vmul.f32 %v653, %v728
            %v732 = vmul.f32 %v694, %v728
            %v733 = vmul.f32 %v696, %v728
            %v734 = vmul.f32 %v655, %v729
            %v735 = vmul.f32 %v657, %v729
            %v736 = vmul.f32 %v698, %v729
            %v737 = vmul.f32 %v700, %v729
            %v738 = vld [vmem:[#allocation2] sm:$0xff]
            %v739 = vadd.f32 %v730, %v734
            %v740 = vrot.slane %v739, 4
            %v741 = vadd.f32 %v739, %v740
            %v742 = vrot.slane %v741, 2
            %v743 = vadd.f32 %v741, %v742
            %v744 = vrot.slane %v743, 1
            %v745 = vadd.f32 %v743, %v744
            %v746 = vadd.f32 %v731, %v735
            %v747 = vrot.slane %v746, 4
            %v748 = vadd.f32 %v746, %v747
            %v749 = vrot.slane %v748, 2
            %v750 = vadd.f32 %v748, %v749
            %v751 = vrot.slane %v750, 1
            %v752 = vadd.f32 %v750, %v751
            %v753 = vadd.f32 %v732, %v736
            %v754 = vrot.slane %v753, 4
            %v755 = vadd.f32 %v753, %v754
            %v756 = vrot.slane %v755, 2
            %v757 = vadd.f32 %v755, %v756
            %v758 = vrot.slane %v757, 1
            %v759 = vadd.f32 %v757, %v758
            %v760 = vadd.f32 %v733, %v737
            %v761 = vrot.slane %v760, 4
            %v762 = vadd.f32 %v760, %v761
            %v763 = vrot.slane %v762, 2
            %v764 = vadd.f32 %v762, %v763
            %v765 = vrot.slane %v764, 1
            %v766 = vadd.f32 %v764, %v765
            %v767 = vmul.f32 %v730, %v730
            %v768 = vmul.f32 %v731, %v731
            %v769 = vmul.f32 %v732, %v732
            %v770 = vmul.f32 %v733, %v733
            %v771 = vmul.f32 %v734, %v734
            %v772 = vmul.f32 %v735, %v735
            %v773 = vmul.f32 %v736, %v736
            %v774 = vmul.f32 %v737, %v737
            %v775 = vadd.f32 %v767, %v771
            %v776 = vrot.slane %v775, 4
            %v777 = vadd.f32 %v775, %v776
            %v778 = vrot.slane %v777, 2
            %v779 = vadd.f32 %v777, %v778
            %v780 = vrot.slane %v779, 1
            %v781 = vadd.f32 %v779, %v780
            %v782 = vadd.f32 %v768, %v772
            %v783 = vrot.slane %v782, 4
            %v784 = vadd.f32 %v782, %v783
            %v785 = vrot.slane %v784, 2
            %v786 = vadd.f32 %v784, %v785
            %v787 = vrot.slane %v786, 1
            %v788 = vadd.f32 %v786, %v787
            %v789 = vadd.f32 %v769, %v773
            %v790 = vrot.slane %v789, 4
            %v791 = vadd.f32 %v789, %v790
            %v792 = vrot.slane %v791, 2
            %v793 = vadd.f32 %v791, %v792
            %v794 = vrot.slane %v793, 1
            %v795 = vadd.f32 %v793, %v794
            %v796 = vadd.f32 %v770, %v774
            %v797 = vrot.slane %v796, 4
            %v798 = vadd.f32 %v796, %v797
            %v799 = vrot.slane %v798, 2
            %v800 = vadd.f32 %v798, %v799
            %v801 = vrot.slane %v800, 1
            %v802 = vadd.f32 %v800, %v801
            %vm803 = vcmask 1040384
            %v804 = vsel %vm803, %v745, %v781
            %v805 = vsel %vm803, %v752, %v788
            %v806 = vsel %vm803, %v759, %v795
            %v807 = vsel %vm803, %v766, %v802
            %v812 = vcombine.low %v804, %v805
            %v813 = vcombine.low %v806, %v807
            %v815 = vunpack.c.l.s4 1983009808
            %v816 = vunpack.c.0.s8 %v815
            %v817 = vlaneseq
            %v818 = vshrl.u32 %v817, 7
            %v819 = vsub.s32 %v816, %v818
            %v820 = vrot.slane %v812, %v819
            %v822 = vunpack.c.l.s4 1983009808
            %v823 = vunpack.c.0.s8 %v822
            %v824 = vlaneseq
            %v825 = vshrl.u32 %v824, 7
            %v826 = vsub.s32 %v823, %v825
            %v827 = vrot.slane %v813, %v826
            %v828 = vcombine.low %v820, %v827
            %v830 = vadd.f32 %v738, %v828
            %831 = vst [vmem:[#allocation2] sm:$0xff] %v830
          $region72: #{_forward.1} parent=67 // pred_fallthru
            _
          %p832 = scmp.ne.s32.totalorder %s25, 0
          // Predicated region
          $region73: #{_forward.1} parent=67 // pred_check
            %p833 = pneg %p832
          $region74: #{_forward.1} parent=67 // pred_check_branch
            %835 = sbr.rel (%p833) target = $region76
          $region75: #{_forward.1} parent=67 // pred_region
            %v836 = vld [vmem:[#allocation2] sm:$0xff]
            %v837 = vadd.f32 %v651, %v655
            %v838 = vrot.slane %v837, 4
            %v839 = vadd.f32 %v837, %v838
            %v840 = vrot.slane %v839, 2
            %v841 = vadd.f32 %v839, %v840
            %v842 = vrot.slane %v841, 1
            %v843 = vadd.f32 %v841, %v842
            %v844 = vadd.f32 %v653, %v657
            %v845 = vrot.slane %v844, 4
            %v846 = vadd.f32 %v844, %v845
            %v847 = vrot.slane %v846, 2
            %v848 = vadd.f32 %v846, %v847
            %v849 = vrot.slane %v848, 1
            %v850 = vadd.f32 %v848, %v849
            %v851 = vadd.f32 %v694, %v698
            %v852 = vrot.slane %v851, 4
            %v853 = vadd.f32 %v851, %v852
            %v854 = vrot.slane %v853, 2
            %v855 = vadd.f32 %v853, %v854
            %v856 = vrot.slane %v855, 1
            %v857 = vadd.f32 %v855, %v856
            %v858 = vadd.f32 %v696, %v700
            %v859 = vrot.slane %v858, 4
            %v860 = vadd.f32 %v858, %v859
            %v861 = vrot.slane %v860, 2
            %v862 = vadd.f32 %v860, %v861
            %v863 = vrot.slane %v862, 1
            %v864 = vadd.f32 %v862, %v863
            %v865 = vmul.f32 %v651, %v651
            %v866 = vmul.f32 %v653, %v653
            %v867 = vmul.f32 %v694, %v694
            %v868 = vmul.f32 %v696, %v696
            %v869 = vmul.f32 %v655, %v655
            %v870 = vmul.f32 %v657, %v657
            %v871 = vmul.f32 %v698, %v698
            %v872 = vmul.f32 %v700, %v700
            %v873 = vadd.f32 %v865, %v869
            %v874 = vrot.slane %v873, 4
            %v875 = vadd.f32 %v873, %v874
            %v876 = vrot.slane %v875, 2
            %v877 = vadd.f32 %v875, %v876
            %v878 = vrot.slane %v877, 1
            %v879 = vadd.f32 %v877, %v878
            %v880 = vadd.f32 %v866, %v870
            %v881 = vrot.slane %v880, 4
            %v882 = vadd.f32 %v880, %v881
            %v883 = vrot.slane %v882, 2
            %v884 = vadd.f32 %v882, %v883
            %v885 = vrot.slane %v884, 1
            %v886 = vadd.f32 %v884, %v885
            %v887 = vadd.f32 %v867, %v871
            %v888 = vrot.slane %v887, 4
            %v889 = vadd.f32 %v887, %v888
            %v890 = vrot.slane %v889, 2
            %v891 = vadd.f32 %v889, %v890
            %v892 = vrot.slane %v891, 1
            %v893 = vadd.f32 %v891, %v892
            %v894 = vadd.f32 %v868, %v872
            %v895 = vrot.slane %v894, 4
            %v896 = vadd.f32 %v894, %v895
            %v897 = vrot.slane %v896, 2
            %v898 = vadd.f32 %v896, %v897
            %v899 = vrot.slane %v898, 1
            %v900 = vadd.f32 %v898, %v899
            %vm901 = vcmask 1040384
            %v902 = vsel %vm901, %v843, %v879
            %v903 = vsel %vm901, %v850, %v886
            %v904 = vsel %vm901, %v857, %v893
            %v905 = vsel %vm901, %v864, %v900
            %v910 = vcombine.low %v902, %v903
            %v911 = vcombine.low %v904, %v905
            %v913 = vunpack.c.l.s4 1983009808
            %v914 = vunpack.c.0.s8 %v913
            %v915 = vlaneseq
            %v916 = vshrl.u32 %v915, 7
            %v917 = vsub.s32 %v914, %v916
            %v918 = vrot.slane %v910, %v917
            %v920 = vunpack.c.l.s4 1983009808
            %v921 = vunpack.c.0.s8 %v920
            %v922 = vlaneseq
            %v923 = vshrl.u32 %v922, 7
            %v924 = vsub.s32 %v921, %v923
            %v925 = vrot.slane %v911, %v924
            %v926 = vcombine.low %v918, %v925
            %v928 = vadd.f32 %v836, %v926
            %929 = vst [vmem:[#allocation2] sm:$0xff] %v928
          $region76: #{_forward.1} parent=67 // pred_fallthru
            _
        $region68: #{_forward.1} parent=47 // pred_fallthru
          _
        %p930 = scmp.eq.s32.totalorder %s24, 1
        %p931 = pnand %p930, %p368
        %p932 = pneg %p931
        // Predicated region
        $region77: #{_forward.1} parent=47 // pred_check
          _
        $region78: #{_forward.1} parent=47 // pred_check_branch
          %934 = sbr.rel (%p931) target = $region80
        $region79: #{_forward.1} parent=47 // pred_region
          %v935 = vld [vmem:[#allocation2] ss:$2 sm:$0xf]
          %v936 = vmul.f32 %v935, 0.125
          %s937 = scalar_lea.vmem [#allocation2], 1
          %v938 = vld [vmem:[%s937] ss:$2 sm:$0xf]
          %v939 = vmul.f32 %v938, 0.125
          %v940 = vmul.f32 %v936, %v936
          %v941 = vsub.f32 %v939, %v940
          %v942 = vadd.f32 %v941, 1e-05
          %v943 = vrsqrt.pop %v942
          %v946 = vunpack.c.l.s4 286326784
          %v947 = vunpack.c.0.s8 %v946
          %v948 = vlaneseq
          %v949 = vshrl.u32 %v948, 7
          %v950 = vsub.s32 %v947, %v949
          %v951 = vrot.slane %v943, %v950
          %v953 = vunpack.c.l.s4 858989090
          %v954 = vunpack.c.0.s8 %v953
          %v955 = vlaneseq
          %v956 = vshrl.u32 %v955, 7
          %v957 = vsub.s32 %v954, %v956
          %v958 = vrot.slane %v943, %v957
          %v961 = vmul.f32 %v363, %v951
          %v962 = vmul.f32 %v364, %v958
          %v966 = vunpack.c.l.s4 1966171168
          %v967 = vunpack.c.0.s8 %v966
          %v968 = vlaneseq
          %v969 = vshrl.u32 %v968, 7
          %v970 = vsub.s32 %v967, %v969
          %v971 = vrot.slane %v961, %v970
          %v973 = vunpack.c.l.s4 1966171168
          %v974 = vunpack.c.0.s8 %v973
          %v975 = vlaneseq
          %v976 = vshrl.u32 %v975, 7
          %v977 = vsub.s32 %v974, %v976
          %v978 = vrot.slane %v962, %v977
          %v979 = vcombine.high %v971, %v978
          %v981 = vunpack.c.l.s4 1966171168
          %v982 = vunpack.c.0.s8 %v981
          %v983 = vlaneseq
          %v984 = vshrl.u32 %v983, 7
          %v985 = vsub.s32 %v982, %v984
          %v986 = vrot.slane %v979, %v985
          %v988 = vmul.f32 %v936, %v986
          %v991 = vunpack.c.l.s4 286326784
          %v992 = vunpack.c.0.s8 %v991
          %v993 = vlaneseq
          %v994 = vshrl.u32 %v993, 7
          %v995 = vsub.s32 %v992, %v994
          %v996 = vrot.slane %v988, %v995
          %v998 = vunpack.c.l.s4 858989090
          %v999 = vunpack.c.0.s8 %v998
          %v1000 = vlaneseq
          %v1001 = vshrl.u32 %v1000, 7
          %v1002 = vsub.s32 %v999, %v1001
          %v1003 = vrot.slane %v988, %v1002
          %v1006 = vsub.f32 %v363, %v996
          %v1007 = vsub.f32 %v364, %v1003
          %v1008 = vlaneseq
          %v1009 = vshrl.u32 %v1008, 7
          %v1010 = vsub.s32 1, %v1009
          %v1011 = vrot.slane %v961, %v1010
          %v1012 = vlaneseq
          %v1013 = vshrl.u32 %v1012, 7
          %v1014 = vsub.s32 5, %v1013
          %v1015 = vrot.slane %v961, %v1014
          %v1016 = vlaneseq
          %v1017 = vshrl.u32 %v1016, 7
          %v1018 = vsub.s32 1, %v1017
          %v1019 = vrot.slane %v962, %v1018
          %v1020 = vlaneseq
          %v1021 = vshrl.u32 %v1020, 7
          %v1022 = vsub.s32 5, %v1021
          %v1023 = vrot.slane %v962, %v1022
          %v1030 = vlaneseq
          %v1031 = vshrl.u32 %v1030, 7
          %v1032 = vsub.s32 2, %v1031
          %v1033 = vrot.slane %v1006, %v1032
          %v1034 = vlaneseq
          %v1035 = vshrl.u32 %v1034, 7
          %v1036 = vsub.s32 6, %v1035
          %v1037 = vrot.slane %v1006, %v1036
          %v1038 = vlaneseq
          %v1039 = vshrl.u32 %v1038, 7
          %v1040 = vsub.s32 2, %v1039
          %v1041 = vrot.slane %v1007, %v1040
          %v1042 = vlaneseq
          %v1043 = vshrl.u32 %v1042, 7
          %v1044 = vsub.s32 6, %v1043
          %v1045 = vrot.slane %v1007, %v1044
          %vm1050 = vcmask 1040384
          %v1051 = vsel %vm1050, %v1011, %v1033
          %v1052 = vsel %vm1050, %v1015, %v1037
          %v1053 = vsel %vm1050, %v1019, %v1041
          %v1054 = vsel %vm1050, %v1023, %v1045
          %v1059 = vcombine.low %v1051, %v1052
          %v1060 = vcombine.low %v1053, %v1054
          %v1062 = vunpack.c.l.s4 1983009808
          %v1063 = vunpack.c.0.s8 %v1062
          %v1064 = vlaneseq
          %v1065 = vshrl.u32 %v1064, 7
          %v1066 = vsub.s32 %v1063, %v1065
          %v1067 = vrot.slane %v1059, %v1066
          %v1069 = vunpack.c.l.s4 1983009808
          %v1070 = vunpack.c.0.s8 %v1069
          %v1071 = vlaneseq
          %v1072 = vshrl.u32 %v1071, 7
          %v1073 = vsub.s32 %v1070, %v1072
          %v1074 = vrot.slane %v1060, %v1073
          %v1075 = vcombine.low %v1067, %v1074
          %1077 = vst [vmem:[#allocation2] sm:$0xff] %v1075
        $region80: #{_forward.1} parent=47 // pred_fallthru
          _
        // Predicated region
        $region81: #{_forward.1} parent=47 // pred_check
          %p1078 = pneg %p930
        $region82: #{_forward.1} parent=47 // pred_check_branch
          %1080 = sbr.rel (%p1078) target = $region84
        $region83: #{_forward.1} parent=47 // pred_region
          %s1081 = sshra.s32 %s366, 3
          %s1082 = sand.u32 %s366, 7
          %s1083 = smul.u32 %s1081, 4
          %s1084 = smul.addr %s1083, 8
          %s1085 = scalar_lea.vmem [#allocation4], %s1084
          %v1086 = vld [vmem:[%s1085] sm:$0xff]
          %v1087 = vld [vmem:[%s1085 + $0x8] sm:$0xff]
          %v1088 = vld [vmem:[%s1085 + $0x10] sm:$0xff]
          %v1089 = vld [vmem:[%s1085 + $0x18] sm:$0xff]
          %v1090 = vld [vmem:[%s1085 + $0x20] sm:$0xff]
          %v1091 = vld [vmem:[%s1085 + $0x28] sm:$0xff]
          %v1092 = vld [vmem:[%s1085 + $0x30] sm:$0xff]
          %v1093 = vld [vmem:[%s1085 + $0x38] sm:$0xff]
          %v1094 = vld [vmem:[#allocation2] ss:$2 sm:$0xf]
          %v1096 = vlaneseq
          %v1097 = vshrl.u32 %v1096, 7
          %v1098 = vsub.s32 0, %v1097
          %v1099 = vrot.slane %v1094, %v1098
          %v1100 = vlaneseq
          %v1101 = vshrl.u32 %v1100, 7
          %v1102 = vsub.s32 1, %v1101
          %v1103 = vrot.slane %v1094, %v1102
          %v1104 = vlaneseq
          %v1105 = vshrl.u32 %v1104, 7
          %v1106 = vsub.s32 2, %v1105
          %v1107 = vrot.slane %v1094, %v1106
          %v1108 = vlaneseq
          %v1109 = vshrl.u32 %v1108, 7
          %v1110 = vsub.s32 3, %v1109
          %v1111 = vrot.slane %v1094, %v1110
          %v1116 = vmul.f32 %v1086, %v1099
          %v1117 = vmul.f32 %v1087, %v1103
          %v1118 = vmul.f32 %v1088, %v1107
          %v1119 = vmul.f32 %v1089, %v1111
          %v1120 = vmul.f32 %v1090, %v1099
          %v1121 = vmul.f32 %v1091, %v1103
          %v1122 = vmul.f32 %v1092, %v1107
          %v1123 = vmul.f32 %v1093, %v1111
          %s1124 = scalar_lea.vmem [#allocation2], 1
          %v1125 = vld [vmem:[%s1124] ss:$2 sm:$0xf]
          %v1127 = vlaneseq
          %v1128 = vshrl.u32 %v1127, 7
          %v1129 = vsub.s32 0, %v1128
          %v1130 = vrot.slane %v1125, %v1129
          %v1131 = vlaneseq
          %v1132 = vshrl.u32 %v1131, 7
          %v1133 = vsub.s32 1, %v1132
          %v1134 = vrot.slane %v1125, %v1133
          %v1135 = vlaneseq
          %v1136 = vshrl.u32 %v1135, 7
          %v1137 = vsub.s32 2, %v1136
          %v1138 = vrot.slane %v1125, %v1137
          %v1139 = vlaneseq
          %v1140 = vshrl.u32 %v1139, 7
          %v1141 = vsub.s32 3, %v1140
          %v1142 = vrot.slane %v1125, %v1141
          %v1147 = vadd.f32 %v1116, %v1130
          %v1148 = vadd.f32 %v1117, %v1134
          %v1149 = vadd.f32 %v1118, %v1138
          %v1150 = vadd.f32 %v1119, %v1142
          %v1151 = vadd.f32 %v1120, %v1130
          %v1152 = vadd.f32 %v1121, %v1134
          %v1153 = vadd.f32 %v1122, %v1138
          %v1154 = vadd.f32 %v1123, %v1142
          %v1155 = vmax.f32 %v1147, 0.0
          %v1156 = vmax.f32 %v1148, 0.0
          %v1157 = vmax.f32 %v1149, 0.0
          %v1158 = vmax.f32 %v1150, 0.0
          %v1159 = vmax.f32 %v1151, 0.0
          %v1160 = vmax.f32 %v1152, 0.0
          %v1161 = vmax.f32 %v1153, 0.0
          %v1162 = vmax.f32 %v1154, 0.0
          %v1163 = vpack.c.bf16 %v1159, %v1155
          %v1164 = vpack.c.bf16 %v1160, %v1156
          %v1165 = vpack.c.bf16 %v1161, %v1157
          %v1166 = vpack.c.bf16 %v1162, %v1158
          %v1167 = vld [vmem:[#allocation8] sm:$0xff]
          %v1168 = vld [vmem:[#allocation8 + $0x8] sm:$0xff]
          %v1169 = vld [vmem:[#allocation8 + $0x10] sm:$0xff]
          %v1170 = vld [vmem:[#allocation8 + $0x18] sm:$0xff]
          %v1171 = vld [vmem:[#allocation8 + $0x20] sm:$0xff]
          %v1172 = vld [vmem:[#allocation8 + $0x28] sm:$0xff]
          %v1173 = vld [vmem:[#allocation8 + $0x30] sm:$0xff]
          %v1174 = vld [vmem:[#allocation8 + $0x38] sm:$0xff]
          %v1175 = vld [vmem:[#allocation8 + $0x40] sm:$0xff]
          %v1176 = vld [vmem:[#allocation8 + $0x48] sm:$0xff]
          %v1177 = vld [vmem:[#allocation8 + $0x50] sm:$0xff]
          %v1178 = vld [vmem:[#allocation8 + $0x58] sm:$0xff]
          %v1179 = vld [vmem:[#allocation8 + $0x60] sm:$0xff]
          %v1180 = vld [vmem:[#allocation8 + $0x68] sm:$0xff]
          %v1181 = vld [vmem:[#allocation8 + $0x70] sm:$0xff]
          %v1182 = vld [vmem:[#allocation8 + $0x78] sm:$0xff]
          %v1183 = vld [vmem:[#allocation8 + $0x80] sm:$0xff]
          %v1184 = vld [vmem:[#allocation8 + $0x88] sm:$0xff]
          %v1185 = vld [vmem:[#allocation8 + $0x90] sm:$0xff]
          %v1186 = vld [vmem:[#allocation8 + $0x98] sm:$0xff]
          %v1187 = vld [vmem:[#allocation8 + $0xa0] sm:$0xff]
          %v1188 = vld [vmem:[#allocation8 + $0xa8] sm:$0xff]
          %v1189 = vld [vmem:[#allocation8 + $0xb0] sm:$0xff]
          %v1190 = vld [vmem:[#allocation8 + $0xb8] sm:$0xff]
          %v1191 = vld [vmem:[#allocation8 + $0xc0] sm:$0xff]
          %v1192 = vld [vmem:[#allocation8 + $0xc8] sm:$0xff]
          %v1193 = vld [vmem:[#allocation8 + $0xd0] sm:$0xff]
          %v1194 = vld [vmem:[#allocation8 + $0xd8] sm:$0xff]
          %v1195 = vld [vmem:[#allocation8 + $0xe0] sm:$0xff]
          %v1196 = vld [vmem:[#allocation8 + $0xe8] sm:$0xff]
          %v1197 = vld [vmem:[#allocation8 + $0xf0] sm:$0xff]
          %v1198 = vld [vmem:[#allocation8 + $0xf8] sm:$0xff]
          %v1199 = vld [vmem:[#allocation8 + $0x100] sm:$0xff]
          %v1200 = vld [vmem:[#allocation8 + $0x108] sm:$0xff]
          %v1201 = vld [vmem:[#allocation8 + $0x110] sm:$0xff]
          %v1202 = vld [vmem:[#allocation8 + $0x118] sm:$0xff]
          %v1203 = vld [vmem:[#allocation8 + $0x120] sm:$0xff]
          %v1204 = vld [vmem:[#allocation8 + $0x128] sm:$0xff]
          %v1205 = vld [vmem:[#allocation8 + $0x130] sm:$0xff]
          %v1206 = vld [vmem:[#allocation8 + $0x138] sm:$0xff]
          %v1207 = vld [vmem:[#allocation8 + $0x140] sm:$0xff]
          %v1208 = vld [vmem:[#allocation8 + $0x148] sm:$0xff]
          %v1209 = vld [vmem:[#allocation8 + $0x150] sm:$0xff]
          %v1210 = vld [vmem:[#allocation8 + $0x158] sm:$0xff]
          %v1211 = vld [vmem:[#allocation8 + $0x160] sm:$0xff]
          %v1212 = vld [vmem:[#allocation8 + $0x168] sm:$0xff]
          %v1213 = vld [vmem:[#allocation8 + $0x170] sm:$0xff]
          %v1214 = vld [vmem:[#allocation8 + $0x178] sm:$0xff]
          %v1215 = vld [vmem:[#allocation8 + $0x180] sm:$0xff]
          %v1216 = vld [vmem:[#allocation8 + $0x188] sm:$0xff]
          %v1217 = vld [vmem:[#allocation8 + $0x190] sm:$0xff]
          %v1218 = vld [vmem:[#allocation8 + $0x198] sm:$0xff]
          %v1219 = vld [vmem:[#allocation8 + $0x1a0] sm:$0xff]
          %v1220 = vld [vmem:[#allocation8 + $0x1a8] sm:$0xff]
          %v1221 = vld [vmem:[#allocation8 + $0x1b0] sm:$0xff]
          %v1222 = vld [vmem:[#allocation8 + $0x1b8] sm:$0xff]
          %v1223 = vld [vmem:[#allocation8 + $0x1c0] sm:$0xff]
          %v1224 = vld [vmem:[#allocation8 + $0x1c8] sm:$0xff]
          %v1225 = vld [vmem:[#allocation8 + $0x1d0] sm:$0xff]
          %v1226 = vld [vmem:[#allocation8 + $0x1d8] sm:$0xff]
          %v1227 = vld [vmem:[#allocation8 + $0x1e0] sm:$0xff]
          %v1228 = vld [vmem:[#allocation8 + $0x1e8] sm:$0xff]
          %v1229 = vld [vmem:[#allocation8 + $0x1f0] sm:$0xff]
          %v1230 = vld [vmem:[#allocation8 + $0x1f8] sm:$0xff]
          %v1232 = vlaneseq
          %v1233 = vshrl.u32 %v1232, 7
          %v1234 = vsub.s32 0, %v1233
          %v1235 = vrot.slane %v365, %v1234
          %v1236 = vlaneseq
          %v1237 = vshrl.u32 %v1236, 7
          %v1238 = vsub.s32 4, %v1237
          %v1239 = vrot.slane %v365, %v1238
          %v1242 = vlaneseq
          %v1243 = vshrl.u32 %v1242, 7
          %v1244 = vsub.s32 0, %v1243
          %v1245 = vrot.slane %v1235, %v1244
          %v1246 = vlaneseq
          %v1247 = vshrl.u32 %v1246, 7
          %v1248 = vsub.s32 0, %v1247
          %v1249 = vrot.slane %v1239, %v1248
          %v1314 = vunpack.c.l.b16 %v1167
          %v1315 = vunpack.c.h.b16 %v1167
          %v1316 = vunpack.c.l.b16 %v1168
          %v1317 = vunpack.c.h.b16 %v1168
          %v1318 = vunpack.c.l.b16 %v1169
          %v1319 = vunpack.c.h.b16 %v1169
          %v1320 = vunpack.c.l.b16 %v1170
          %v1321 = vunpack.c.h.b16 %v1170
          %v1322 = vunpack.c.l.b16 %v1171
          %v1323 = vunpack.c.h.b16 %v1171
          %v1324 = vunpack.c.l.b16 %v1172
          %v1325 = vunpack.c.h.b16 %v1172
          %v1326 = vunpack.c.l.b16 %v1173
          %v1327 = vunpack.c.h.b16 %v1173
          %v1328 = vunpack.c.l.b16 %v1174
          %v1329 = vunpack.c.h.b16 %v1174
          %v1330 = vunpack.c.l.b16 %v1175
          %v1331 = vunpack.c.h.b16 %v1175
          %v1332 = vunpack.c.l.b16 %v1176
          %v1333 = vunpack.c.h.b16 %v1176
          %v1334 = vunpack.c.l.b16 %v1177
          %v1335 = vunpack.c.h.b16 %v1177
          %v1336 = vunpack.c.l.b16 %v1178
          %v1337 = vunpack.c.h.b16 %v1178
          %v1338 = vunpack.c.l.b16 %v1179
          %v1339 = vunpack.c.h.b16 %v1179
          %v1340 = vunpack.c.l.b16 %v1180
          %v1341 = vunpack.c.h.b16 %v1180
          %v1342 = vunpack.c.l.b16 %v1181
          %v1343 = vunpack.c.h.b16 %v1181
          %v1344 = vunpack.c.l.b16 %v1182
          %v1345 = vunpack.c.h.b16 %v1182
          %v1346 = vunpack.c.l.b16 %v1183
          %v1347 = vunpack.c.h.b16 %v1183
          %v1348 = vunpack.c.l.b16 %v1184
          %v1349 = vunpack.c.h.b16 %v1184
          %v1350 = vunpack.c.l.b16 %v1185
          %v1351 = vunpack.c.h.b16 %v1185
          %v1352 = vunpack.c.l.b16 %v1186
          %v1353 = vunpack.c.h.b16 %v1186
          %v1354 = vunpack.c.l.b16 %v1187
          %v1355 = vunpack.c.h.b16 %v1187
          %v1356 = vunpack.c.l.b16 %v1188
          %v1357 = vunpack.c.h.b16 %v1188
          %v1358 = vunpack.c.l.b16 %v1189
          %v1359 = vunpack.c.h.b16 %v1189
          %v1360 = vunpack.c.l.b16 %v1190
          %v1361 = vunpack.c.h.b16 %v1190
          %v1362 = vunpack.c.l.b16 %v1191
          %v1363 = vunpack.c.h.b16 %v1191
          %v1364 = vunpack.c.l.b16 %v1192
          %v1365 = vunpack.c.h.b16 %v1192
          %v1366 = vunpack.c.l.b16 %v1193
          %v1367 = vunpack.c.h.b16 %v1193
          %v1368 = vunpack.c.l.b16 %v1194
          %v1369 = vunpack.c.h.b16 %v1194
          %v1370 = vunpack.c.l.b16 %v1195
          %v1371 = vunpack.c.h.b16 %v1195
          %v1372 = vunpack.c.l.b16 %v1196
          %v1373 = vunpack.c.h.b16 %v1196
          %v1374 = vunpack.c.l.b16 %v1197
          %v1375 = vunpack.c.h.b16 %v1197
          %v1376 = vunpack.c.l.b16 %v1198
          %v1377 = vunpack.c.h.b16 %v1198
          %v1378 = vunpack.c.l.b16 %v1199
          %v1379 = vunpack.c.h.b16 %v1199
          %v1380 = vunpack.c.l.b16 %v1200
          %v1381 = vunpack.c.h.b16 %v1200
          %v1382 = vunpack.c.l.b16 %v1201
          %v1383 = vunpack.c.h.b16 %v1201
          %v1384 = vunpack.c.l.b16 %v1202
          %v1385 = vunpack.c.h.b16 %v1202
          %v1386 = vunpack.c.l.b16 %v1203
          %v1387 = vunpack.c.h.b16 %v1203
          %v1388 = vunpack.c.l.b16 %v1204
          %v1389 = vunpack.c.h.b16 %v1204
          %v1390 = vunpack.c.l.b16 %v1205
          %v1391 = vunpack.c.h.b16 %v1205
          %v1392 = vunpack.c.l.b16 %v1206
          %v1393 = vunpack.c.h.b16 %v1206
          %v1394 = vunpack.c.l.b16 %v1207
          %v1395 = vunpack.c.h.b16 %v1207
          %v1396 = vunpack.c.l.b16 %v1208
          %v1397 = vunpack.c.h.b16 %v1208
          %v1398 = vunpack.c.l.b16 %v1209
          %v1399 = vunpack.c.h.b16 %v1209
          %v1400 = vunpack.c.l.b16 %v1210
          %v1401 = vunpack.c.h.b16 %v1210
          %v1402 = vunpack.c.l.b16 %v1211
          %v1403 = vunpack.c.h.b16 %v1211
          %v1404 = vunpack.c.l.b16 %v1212
          %v1405 = vunpack.c.h.b16 %v1212
          %v1406 = vunpack.c.l.b16 %v1213
          %v1407 = vunpack.c.h.b16 %v1213
          %v1408 = vunpack.c.l.b16 %v1214
          %v1409 = vunpack.c.h.b16 %v1214
          %v1410 = vunpack.c.l.b16 %v1215
          %v1411 = vunpack.c.h.b16 %v1215
          %v1412 = vunpack.c.l.b16 %v1216
          %v1413 = vunpack.c.h.b16 %v1216
          %v1414 = vunpack.c.l.b16 %v1217
          %v1415 = vunpack.c.h.b16 %v1217
          %v1416 = vunpack.c.l.b16 %v1218
          %v1417 = vunpack.c.h.b16 %v1218
          %v1418 = vunpack.c.l.b16 %v1219
          %v1419 = vunpack.c.h.b16 %v1219
          %v1420 = vunpack.c.l.b16 %v1220
          %v1421 = vunpack.c.h.b16 %v1220
          %v1422 = vunpack.c.l.b16 %v1221
          %v1423 = vunpack.c.h.b16 %v1221
          %v1424 = vunpack.c.l.b16 %v1222
          %v1425 = vunpack.c.h.b16 %v1222
          %v1426 = vunpack.c.l.b16 %v1223
          %v1427 = vunpack.c.h.b16 %v1223
          %v1428 = vunpack.c.l.b16 %v1224
          %v1429 = vunpack.c.h.b16 %v1224
          %v1430 = vunpack.c.l.b16 %v1225
          %v1431 = vunpack.c.h.b16 %v1225
          %v1432 = vunpack.c.l.b16 %v1226
          %v1433 = vunpack.c.h.b16 %v1226
          %v1434 = vunpack.c.l.b16 %v1227
          %v1435 = vunpack.c.h.b16 %v1227
          %v1436 = vunpack.c.l.b16 %v1228
          %v1437 = vunpack.c.h.b16 %v1228
          %v1438 = vunpack.c.l.b16 %v1229
          %v1439 = vunpack.c.h.b16 %v1229
          %v1440 = vunpack.c.l.b16 %v1230
          %v1441 = vunpack.c.h.b16 %v1230
          %v1442 = vpack.c.b16 %v1316, %v1314
          %v1443 = vpack.c.b16 %v1317, %v1315
          %v1444 = vpack.c.b16 %v1320, %v1318
          %v1445 = vpack.c.b16 %v1321, %v1319
          %v1446 = vpack.c.b16 %v1324, %v1322
          %v1447 = vpack.c.b16 %v1325, %v1323
          %v1448 = vpack.c.b16 %v1328, %v1326
          %v1449 = vpack.c.b16 %v1329, %v1327
          %v1450 = vpack.c.b16 %v1332, %v1330
          %v1451 = vpack.c.b16 %v1333, %v1331
          %v1452 = vpack.c.b16 %v1336, %v1334
          %v1453 = vpack.c.b16 %v1337, %v1335
          %v1454 = vpack.c.b16 %v1340, %v1338
          %v1455 = vpack.c.b16 %v1341, %v1339
          %v1456 = vpack.c.b16 %v1344, %v1342
          %v1457 = vpack.c.b16 %v1345, %v1343
          %v1458 = vpack.c.b16 %v1348, %v1346
          %v1459 = vpack.c.b16 %v1349, %v1347
          %v1460 = vpack.c.b16 %v1352, %v1350
          %v1461 = vpack.c.b16 %v1353, %v1351
          %v1462 = vpack.c.b16 %v1356, %v1354
          %v1463 = vpack.c.b16 %v1357, %v1355
          %v1464 = vpack.c.b16 %v1360, %v1358
          %v1465 = vpack.c.b16 %v1361, %v1359
          %v1466 = vpack.c.b16 %v1364, %v1362
          %v1467 = vpack.c.b16 %v1365, %v1363
          %v1468 = vpack.c.b16 %v1368, %v1366
          %v1469 = vpack.c.b16 %v1369, %v1367
          %v1470 = vpack.c.b16 %v1372, %v1370
          %v1471 = vpack.c.b16 %v1373, %v1371
          %v1472 = vpack.c.b16 %v1376, %v1374
          %v1473 = vpack.c.b16 %v1377, %v1375
          %v1474 = vpack.c.b16 %v1380, %v1378
          %v1475 = vpack.c.b16 %v1381, %v1379
          %v1476 = vpack.c.b16 %v1384, %v1382
          %v1477 = vpack.c.b16 %v1385, %v1383
          %v1478 = vpack.c.b16 %v1388, %v1386
          %v1479 = vpack.c.b16 %v1389, %v1387
          %v1480 = vpack.c.b16 %v1392, %v1390
          %v1481 = vpack.c.b16 %v1393, %v1391
          %v1482 = vpack.c.b16 %v1396, %v1394
          %v1483 = vpack.c.b16 %v1397, %v1395
          %v1484 = vpack.c.b16 %v1400, %v1398
          %v1485 = vpack.c.b16 %v1401, %v1399
          %v1486 = vpack.c.b16 %v1404, %v1402
          %v1487 = vpack.c.b16 %v1405, %v1403
          %v1488 = vpack.c.b16 %v1408, %v1406
          %v1489 = vpack.c.b16 %v1409, %v1407
          %v1490 = vpack.c.b16 %v1412, %v1410
          %v1491 = vpack.c.b16 %v1413, %v1411
          %v1492 = vpack.c.b16 %v1416, %v1414
          %v1493 = vpack.c.b16 %v1417, %v1415
          %v1494 = vpack.c.b16 %v1420, %v1418
          %v1495 = vpack.c.b16 %v1421, %v1419
          %v1496 = vpack.c.b16 %v1424, %v1422
          %v1497 = vpack.c.b16 %v1425, %v1423
          %v1498 = vpack.c.b16 %v1428, %v1426
          %v1499 = vpack.c.b16 %v1429, %v1427
          %v1500 = vpack.c.b16 %v1432, %v1430
          %v1501 = vpack.c.b16 %v1433, %v1431
          %v1502 = vpack.c.b16 %v1436, %v1434
          %v1503 = vpack.c.b16 %v1437, %v1435
          %v1504 = vpack.c.b16 %v1440, %v1438
          %v1505 = vpack.c.b16 %v1441, %v1439
          %1570 = vmatprep.subr.bf16.mxu0 %v1443
          %1571 = vmatpush1.bf16.msra.mxu0 %v1442
          %1572 = vmatprep.subr.bf16.mxu0 %v1445
          %1573 = vmatpush1.bf16.msra.mxu0 %v1444
          %1574 = vmatprep.subr.bf16.mxu0 %v1447
          %1575 = vmatpush1.bf16.msra.mxu0 %v1446
          %1576 = vmatprep.subr.bf16.mxu0 %v1449
          %1577 = vmatpush1.bf16.msra.mxu0 %v1448
          %1578 = vmatprep.subr.bf16.mxu0 %v1451
          %1579 = vmatpush1.bf16.msra.mxu0 %v1450
          %1580 = vmatprep.subr.bf16.mxu0 %v1453
          %1581 = vmatpush1.bf16.msra.mxu0 %v1452
          %1582 = vmatprep.subr.bf16.mxu0 %v1455
          %1583 = vmatpush1.bf16.msra.mxu0 %v1454
          %1584 = vmatprep.subr.bf16.mxu0 %v1457
          %1585 = vmatpush1.bf16.msra.mxu0 %v1456
          %1586 = vmatprep.subr.bf16.mxu0 %v1459
          %1587 = vmatpush1.bf16.msra.mxu0 %v1458
          %1588 = vmatprep.subr.bf16.mxu0 %v1461
          %1589 = vmatpush1.bf16.msra.mxu0 %v1460
          %1590 = vmatprep.subr.bf16.mxu0 %v1463
          %1591 = vmatpush1.bf16.msra.mxu0 %v1462
          %1592 = vmatprep.subr.bf16.mxu0 %v1465
          %1593 = vmatpush1.bf16.msra.mxu0 %v1464
          %1594 = vmatprep.subr.bf16.mxu0 %v1467
          %1595 = vmatpush1.bf16.msra.mxu0 %v1466
          %1596 = vmatprep.subr.bf16.mxu0 %v1469
          %1597 = vmatpush1.bf16.msra.mxu0 %v1468
          %1598 = vmatprep.subr.bf16.mxu0 %v1471
          %1599 = vmatpush1.bf16.msra.mxu0 %v1470
          %1600 = vmatprep.subr.bf16.mxu0 %v1473
          %1601 = vmatpush1.bf16.msra.mxu0 %v1472
          %1602 = vmatprep.mubr.bf16.mxu0 %v1164
          %1603 = vmatmul.mubr.bf16.gmra.mrb[0].mxu0 %v1163
          %v1604 = vpop.f32.mrb[0].mxu0
          %v1605 = vadd.f32 %v1245, %v1604
          %v1606 = vpop.f32.mrb[0].mxu0
          %v1607 = vadd.f32 %v1249, %v1606
          %v1608 = vpop.f32.mrb[0].mxu0
          %v1609 = vadd.f32 %v1245, %v1608
          %v1610 = vpop.f32.mrb[0].mxu0
          %v1611 = vadd.f32 %v1249, %v1610
          %1612 = vdwg.mxu0
          %1613 = vmatprep.subr.bf16.mxu0 %v1475
          %1614 = vmatpush1.bf16.msra.mxu0 %v1474
          %1615 = vmatprep.subr.bf16.mxu0 %v1477
          %1616 = vmatpush1.bf16.msra.mxu0 %v1476
          %1617 = vmatprep.subr.bf16.mxu0 %v1479
          %1618 = vmatpush1.bf16.msra.mxu0 %v1478
          %1619 = vmatprep.subr.bf16.mxu0 %v1481
          %1620 = vmatpush1.bf16.msra.mxu0 %v1480
          %1621 = vmatprep.subr.bf16.mxu0 %v1483
          %1622 = vmatpush1.bf16.msra.mxu0 %v1482
          %1623 = vmatprep.subr.bf16.mxu0 %v1485
          %1624 = vmatpush1.bf16.msra.mxu0 %v1484
          %1625 = vmatprep.subr.bf16.mxu0 %v1487
          %1626 = vmatpush1.bf16.msra.mxu0 %v1486
          %1627 = vmatprep.subr.bf16.mxu0 %v1489
          %1628 = vmatpush1.bf16.msra.mxu0 %v1488
          %1629 = vmatprep.subr.bf16.mxu0 %v1491
          %1630 = vmatpush1.bf16.msra.mxu0 %v1490
          %1631 = vmatprep.subr.bf16.mxu0 %v1493
          %1632 = vmatpush1.bf16.msra.mxu0 %v1492
          %1633 = vmatprep.subr.bf16.mxu0 %v1495
          %1634 = vmatpush1.bf16.msra.mxu0 %v1494
          %1635 = vmatprep.subr.bf16.mxu0 %v1497
          %1636 = vmatpush1.bf16.msra.mxu0 %v1496
          %1637 = vmatprep.subr.bf16.mxu0 %v1499
          %1638 = vmatpush1.bf16.msra.mxu0 %v1498
          %1639 = vmatprep.subr.bf16.mxu0 %v1501
          %1640 = vmatpush1.bf16.msra.mxu0 %v1500
          %1641 = vmatprep.subr.bf16.mxu0 %v1503
          %1642 = vmatpush1.bf16.msra.mxu0 %v1502
          %1643 = vmatprep.subr.bf16.mxu0 %v1505
          %1644 = vmatpush1.bf16.msra.mxu0 %v1504
          %1645 = vmatprep.mubr.bf16.mxu0 %v1166
          %1646 = vmatmul.mubr.bf16.gmra.mrb[0].mxu0 %v1165
          %v1647 = vpop.f32.mrb[0].mxu0
          %v1648 = vadd.f32 %v1605, %v1647
          %v1649 = vpop.f32.mrb[0].mxu0
          %v1650 = vadd.f32 %v1607, %v1649
          %v1651 = vpop.f32.mrb[0].mxu0
          %v1652 = vadd.f32 %v1609, %v1651
          %v1653 = vpop.f32.mrb[0].mxu0
          %v1654 = vadd.f32 %v1611, %v1653
          %1655 = vdwg.mxu0
          %s1656 = smul.u32 %s1081, 2
          %s1657 = smul.addr %s1656, 8
          %s1658 = scalar_lea.vmem [#allocation5], %s1657
          %1659 = vst [vmem:[%s1658] sm:$0xff] %v1648
          %1660 = vst [vmem:[%s1658 + $0x8] sm:$0xff] %v1650
          %1661 = vst [vmem:[%s1658 + $0x10] sm:$0xff] %v1652
          %1662 = vst [vmem:[%s1658 + $0x18] sm:$0xff] %v1654
          // Predicated region
          $region85: #{_forward.1} parent=83 // pred_check
            %p1663 = pneg %p368
          $region86: #{_forward.1} parent=83 // pred_check_branch
            %1665 = sbr.rel (%p1663) target = $region88
          $region87: #{_forward.1} parent=83 // pred_region
            %v1666 = vlaneseq
            %v1667 = vshrl.u32 %v1666, 7
            %v1668 = vadd.s32 %v1667, 8
            %v1669 = vstv %s366
            %v1670 = vadd.s32 %v1669, %v1667
            %v1671 = vadd.s32 %v1669, %v1668
            %vm1672 = vcmp.lt.s32.totalorder %v1670, 8
            %vm1673 = vcmp.lt.s32.totalorder %v1671, 8
            %v1674 = vsel %vm1672, 1, 0
            %v1675 = vsel %vm1673, 1, 0
            %v1676 = vcvt.s32.f32 %v1674
            %v1677 = vcvt.s32.f32 %v1675
            %v1678 = vmul.f32 %v1648, %v1676
            %v1679 = vmul.f32 %v1650, %v1676
            %v1680 = vmul.f32 %v1652, %v1677
            %v1681 = vmul.f32 %v1654, %v1677
            %v1682 = vld [vmem:[#allocation3] sm:$0xf]
            %v1683 = vadd.f32 %v1678, %v1680
            %v1684 = vrot.slane %v1683, 4
            %v1685 = vadd.f32 %v1683, %v1684
            %v1686 = vrot.slane %v1685, 2
            %v1687 = vadd.f32 %v1685, %v1686
            %v1688 = vrot.slane %v1687, 1
            %v1689 = vadd.f32 %v1687, %v1688
            %v1690 = vadd.f32 %v1679, %v1681
            %v1691 = vrot.slane %v1690, 4
            %v1692 = vadd.f32 %v1690, %v1691
            %v1693 = vrot.slane %v1692, 2
            %v1694 = vadd.f32 %v1692, %v1693
            %v1695 = vrot.slane %v1694, 1
            %v1696 = vadd.f32 %v1694, %v1695
            %v1697 = vmul.f32 %v1678, %v1678
            %v1698 = vmul.f32 %v1679, %v1679
            %v1699 = vmul.f32 %v1680, %v1680
            %v1700 = vmul.f32 %v1681, %v1681
            %v1701 = vadd.f32 %v1697, %v1699
            %v1702 = vrot.slane %v1701, 4
            %v1703 = vadd.f32 %v1701, %v1702
            %v1704 = vrot.slane %v1703, 2
            %v1705 = vadd.f32 %v1703, %v1704
            %v1706 = vrot.slane %v1705, 1
            %v1707 = vadd.f32 %v1705, %v1706
            %v1708 = vadd.f32 %v1698, %v1700
            %v1709 = vrot.slane %v1708, 4
            %v1710 = vadd.f32 %v1708, %v1709
            %v1711 = vrot.slane %v1710, 2
            %v1712 = vadd.f32 %v1710, %v1711
            %v1713 = vrot.slane %v1712, 1
            %v1714 = vadd.f32 %v1712, %v1713
            %vm1715 = vcmask 1040384
            %v1716 = vsel %vm1715, %v1689, %v1707
            %v1717 = vsel %vm1715, %v1696, %v1714
            %v1720 = vcombine.low %v1716, %v1717
            %v1722 = vunpack.c.l.s4 1983009808
            %v1723 = vunpack.c.0.s8 %v1722
            %v1724 = vlaneseq
            %v1725 = vshrl.u32 %v1724, 7
            %v1726 = vsub.s32 %v1723, %v1725
            %v1727 = vrot.slane %v1720, %v1726
            %v1729 = vadd.f32 %v1682, %v1727
            %1730 = vst [vmem:[#allocation3] sm:$0xf] %v1729
          $region88: #{_forward.1} parent=83 // pred_fallthru
            _
          %p1731 = scmp.ne.s32.totalorder %s25, 0
          // Predicated region
          $region89: #{_forward.1} parent=83 // pred_check
            %p1732 = pneg %p1731
          $region90: #{_forward.1} parent=83 // pred_check_branch
            %1734 = sbr.rel (%p1732) target = $region92
          $region91: #{_forward.1} parent=83 // pred_region
            %v1735 = vld [vmem:[#allocation3] sm:$0xf]
            %v1736 = vadd.f32 %v1648, %v1652
            %v1737 = vrot.slane %v1736, 4
            %v1738 = vadd.f32 %v1736, %v1737
            %v1739 = vrot.slane %v1738, 2
            %v1740 = vadd.f32 %v1738, %v1739
            %v1741 = vrot.slane %v1740, 1
            %v1742 = vadd.f32 %v1740, %v1741
            %v1743 = vadd.f32 %v1650, %v1654
            %v1744 = vrot.slane %v1743, 4
            %v1745 = vadd.f32 %v1743, %v1744
            %v1746 = vrot.slane %v1745, 2
            %v1747 = vadd.f32 %v1745, %v1746
            %v1748 = vrot.slane %v1747, 1
            %v1749 = vadd.f32 %v1747, %v1748
            %v1750 = vmul.f32 %v1648, %v1648
            %v1751 = vmul.f32 %v1650, %v1650
            %v1752 = vmul.f32 %v1652, %v1652
            %v1753 = vmul.f32 %v1654, %v1654
            %v1754 = vadd.f32 %v1750, %v1752
            %v1755 = vrot.slane %v1754, 4
            %v1756 = vadd.f32 %v1754, %v1755
            %v1757 = vrot.slane %v1756, 2
            %v1758 = vadd.f32 %v1756, %v1757
            %v1759 = vrot.slane %v1758, 1
            %v1760 = vadd.f32 %v1758, %v1759
            %v1761 = vadd.f32 %v1751, %v1753
            %v1762 = vrot.slane %v1761, 4
            %v1763 = vadd.f32 %v1761, %v1762
            %v1764 = vrot.slane %v1763, 2
            %v1765 = vadd.f32 %v1763, %v1764
            %v1766 = vrot.slane %v1765, 1
            %v1767 = vadd.f32 %v1765, %v1766
            %vm1768 = vcmask 1040384
            %v1769 = vsel %vm1768, %v1742, %v1760
            %v1770 = vsel %vm1768, %v1749, %v1767
            %v1773 = vcombine.low %v1769, %v1770
            %v1775 = vunpack.c.l.s4 1983009808
            %v1776 = vunpack.c.0.s8 %v1775
            %v1777 = vlaneseq
            %v1778 = vshrl.u32 %v1777, 7
            %v1779 = vsub.s32 %v1776, %v1778
            %v1780 = vrot.slane %v1773, %v1779
            %v1782 = vadd.f32 %v1735, %v1780
            %1783 = vst [vmem:[#allocation3] sm:$0xf] %v1782
          $region92: #{_forward.1} parent=83 // pred_fallthru
            _
        $region84: #{_forward.1} parent=47 // pred_fallthru
          _
        %p1784 = scmp.eq.s32.totalorder %s24, 2
        %p1785 = pnand %p1784, %p368
        %p1786 = pneg %p1785
        // Predicated region
        $region93: #{_forward.1} parent=47 // pred_check
          _
        $region94: #{_forward.1} parent=47 // pred_check_branch
          %1788 = sbr.rel (%p1785) target = $region96
        $region95: #{_forward.1} parent=47 // pred_region
          %v1789 = vld [vmem:[#allocation3] ss:$2 sm:$0x3]
          %v1790 = vmul.f32 %v1789, 0.125
          %s1791 = scalar_lea.vmem [#allocation3], 1
          %v1792 = vld [vmem:[%s1791] ss:$2 sm:$0x3]
          %v1793 = vmul.f32 %v1792, 0.125
          %v1794 = vmul.f32 %v1790, %v1790
          %v1795 = vsub.f32 %v1793, %v1794
          %v1796 = vadd.f32 %v1795, 1e-05
          %v1797 = vrsqrt.pop %v1796
          %v1800 = vunpack.c.l.s4 286326784
          %v1801 = vunpack.c.0.s8 %v1800
          %v1802 = vlaneseq
          %v1803 = vshrl.u32 %v1802, 7
          %v1804 = vsub.s32 %v1801, %v1803
          %v1805 = vrot.slane %v1797, %v1804
          %v1807 = vmul.f32 %v365, %v1805
          %v1810 = vunpack.c.l.s4 1966171168
          %v1811 = vunpack.c.0.s8 %v1810
          %v1812 = vlaneseq
          %v1813 = vshrl.u32 %v1812, 7
          %v1814 = vsub.s32 %v1811, %v1813
          %v1815 = vrot.slane %v1807, %v1814
          %v1816 = vcombine.high %v1815, %v1815
          %v1818 = vunpack.c.l.s4 1966171168
          %v1819 = vunpack.c.0.s8 %v1818
          %v1820 = vlaneseq
          %v1821 = vshrl.u32 %v1820, 7
          %v1822 = vsub.s32 %v1819, %v1821
          %v1823 = vrot.slane %v1816, %v1822
          %v1825 = vmul.f32 %v1790, %v1823
          %v1828 = vunpack.c.l.s4 286326784
          %v1829 = vunpack.c.0.s8 %v1828
          %v1830 = vlaneseq
          %v1831 = vshrl.u32 %v1830, 7
          %v1832 = vsub.s32 %v1829, %v1831
          %v1833 = vrot.slane %v1825, %v1832
          %v1835 = vsub.f32 %v365, %v1833
          %v1836 = vlaneseq
          %v1837 = vshrl.u32 %v1836, 7
          %v1838 = vsub.s32 1, %v1837
          %v1839 = vrot.slane %v1807, %v1838
          %v1840 = vlaneseq
          %v1841 = vshrl.u32 %v1840, 7
          %v1842 = vsub.s32 5, %v1841
          %v1843 = vrot.slane %v1807, %v1842
          %v1847 = vlaneseq
          %v1848 = vshrl.u32 %v1847, 7
          %v1849 = vsub.s32 2, %v1848
          %v1850 = vrot.slane %v1835, %v1849
          %v1851 = vlaneseq
          %v1852 = vshrl.u32 %v1851, 7
          %v1853 = vsub.s32 6, %v1852
          %v1854 = vrot.slane %v1835, %v1853
          %vm1857 = vcmask 1040384
          %v1858 = vsel %vm1857, %v1839, %v1850
          %v1859 = vsel %vm1857, %v1843, %v1854
          %v1862 = vcombine.low %v1858, %v1859
          %v1864 = vunpack.c.l.s4 1983009808
          %v1865 = vunpack.c.0.s8 %v1864
          %v1866 = vlaneseq
          %v1867 = vshrl.u32 %v1866, 7
          %v1868 = vsub.s32 %v1865, %v1867
          %v1869 = vrot.slane %v1862, %v1868
          %1871 = vst [vmem:[#allocation3] sm:$0xf] %v1869
        $region96: #{_forward.1} parent=47 // pred_fallthru
          _
        // Predicated region
        $region97: #{_forward.1} parent=47 // pred_check
          %p1872 = pneg %p1784
        $region98: #{_forward.1} parent=47 // pred_check_branch
          %1874 = sbr.rel (%p1872) target = $region100
        $region99: #{_forward.1} parent=47 // pred_region
          %s1875 = sshra.s32 %s366, 3
          %s1876 = sand.u32 %s366, 7
          %s1877 = smul.u32 %s1875, 2
          %s1878 = smul.addr %s1877, 8
          %s1879 = scalar_lea.vmem [#allocation5], %s1878
          %v1880 = vld [vmem:[%s1879] sm:$0xff]
          %v1881 = vld [vmem:[%s1879 + $0x8] sm:$0xff]
          %v1882 = vld [vmem:[%s1879 + $0x10] sm:$0xff]
          %v1883 = vld [vmem:[%s1879 + $0x18] sm:$0xff]
          %v1884 = vld [vmem:[#allocation3] ss:$2 sm:$0x3]
          %v1886 = vlaneseq
          %v1887 = vshrl.u32 %v1886, 7
          %v1888 = vsub.s32 0, %v1887
          %v1889 = vrot.slane %v1884, %v1888
          %v1890 = vlaneseq
          %v1891 = vshrl.u32 %v1890, 7
          %v1892 = vsub.s32 1, %v1891
          %v1893 = vrot.slane %v1884, %v1892
          %v1896 = vmul.f32 %v1880, %v1889
          %v1897 = vmul.f32 %v1881, %v1893
          %v1898 = vmul.f32 %v1882, %v1889
          %v1899 = vmul.f32 %v1883, %v1893
          %s1900 = scalar_lea.vmem [#allocation3], 1
          %v1901 = vld [vmem:[%s1900] ss:$2 sm:$0x3]
          %v1903 = vlaneseq
          %v1904 = vshrl.u32 %v1903, 7
          %v1905 = vsub.s32 0, %v1904
          %v1906 = vrot.slane %v1901, %v1905
          %v1907 = vlaneseq
          %v1908 = vshrl.u32 %v1907, 7
          %v1909 = vsub.s32 1, %v1908
          %v1910 = vrot.slane %v1901, %v1909
          %v1913 = vadd.f32 %v1896, %v1906
          %v1914 = vadd.f32 %v1897, %v1910
          %v1915 = vadd.f32 %v1898, %v1906
          %v1916 = vadd.f32 %v1899, %v1910
          %v1917 = vmax.f32 %v1913, 0.0
          %v1918 = vmax.f32 %v1914, 0.0
          %v1919 = vmax.f32 %v1915, 0.0
          %v1920 = vmax.f32 %v1916, 0.0
          %v1921 = vpack.c.bf16 %v1919, %v1917
          %v1922 = vpack.c.bf16 %v1920, %v1918
          %v1923 = vld [vmem:[#allocation10] sm:$0xf]
          %v1924 = vld [vmem:[#allocation10 + $0x4] sm:$0xf]
          %v1925 = vld [vmem:[#allocation10 + $0x8] sm:$0xf]
          %v1926 = vld [vmem:[#allocation10 + $0xc] sm:$0xf]
          %v1927 = vld [vmem:[#allocation10 + $0x10] sm:$0xf]
          %v1928 = vld [vmem:[#allocation10 + $0x14] sm:$0xf]
          %v1929 = vld [vmem:[#allocation10 + $0x18] sm:$0xf]
          %v1930 = vld [vmem:[#allocation10 + $0x1c] sm:$0xf]
          %v1931 = vld [vmem:[#allocation10 + $0x20] sm:$0xf]
          %v1932 = vld [vmem:[#allocation10 + $0x24] sm:$0xf]
          %v1933 = vld [vmem:[#allocation10 + $0x28] sm:$0xf]
          %v1934 = vld [vmem:[#allocation10 + $0x2c] sm:$0xf]
          %v1935 = vld [vmem:[#allocation10 + $0x30] sm:$0xf]
          %v1936 = vld [vmem:[#allocation10 + $0x34] sm:$0xf]
          %v1937 = vld [vmem:[#allocation10 + $0x38] sm:$0xf]
          %v1938 = vld [vmem:[#allocation10 + $0x3c] sm:$0xf]
          %v1939 = vld [vmem:[#allocation10 + $0x40] sm:$0xf]
          %v1940 = vld [vmem:[#allocation10 + $0x44] sm:$0xf]
          %v1941 = vld [vmem:[#allocation10 + $0x48] sm:$0xf]
          %v1942 = vld [vmem:[#allocation10 + $0x4c] sm:$0xf]
          %v1943 = vld [vmem:[#allocation10 + $0x50] sm:$0xf]
          %v1944 = vld [vmem:[#allocation10 + $0x54] sm:$0xf]
          %v1945 = vld [vmem:[#allocation10 + $0x58] sm:$0xf]
          %v1946 = vld [vmem:[#allocation10 + $0x5c] sm:$0xf]
          %v1947 = vld [vmem:[#allocation10 + $0x60] sm:$0xf]
          %v1948 = vld [vmem:[#allocation10 + $0x64] sm:$0xf]
          %v1949 = vld [vmem:[#allocation10 + $0x68] sm:$0xf]
          %v1950 = vld [vmem:[#allocation10 + $0x6c] sm:$0xf]
          %v1951 = vld [vmem:[#allocation10 + $0x70] sm:$0xf]
          %v1952 = vld [vmem:[#allocation10 + $0x74] sm:$0xf]
          %v1953 = vld [vmem:[#allocation10 + $0x78] sm:$0xf]
          %v1954 = vld [vmem:[#allocation10 + $0x7c] sm:$0xf]
          %v1955 = vld [vmem:[%s6] sm:$0x1]
          %v1957 = vlaneseq
          %v1958 = vshrl.u32 %v1957, 7
          %v1959 = vsub.s32 0, %v1958
          %v1960 = vrot.slane %v1955, %v1959
          %v1994 = vunpack.c.l.b16 %v1923
          %v1995 = vunpack.c.l.b16 %v1924
          %v1996 = vunpack.c.l.b16 %v1925
          %v1997 = vunpack.c.l.b16 %v1926
          %v1998 = vunpack.c.l.b16 %v1927
          %v1999 = vunpack.c.l.b16 %v1928
          %v2000 = vunpack.c.l.b16 %v1929
          %v2001 = vunpack.c.l.b16 %v1930
          %v2002 = vunpack.c.l.b16 %v1931
          %v2003 = vunpack.c.l.b16 %v1932
          %v2004 = vunpack.c.l.b16 %v1933
          %v2005 = vunpack.c.l.b16 %v1934
          %v2006 = vunpack.c.l.b16 %v1935
          %v2007 = vunpack.c.l.b16 %v1936
          %v2008 = vunpack.c.l.b16 %v1937
          %v2009 = vunpack.c.l.b16 %v1938
          %v2010 = vunpack.c.l.b16 %v1939
          %v2011 = vunpack.c.l.b16 %v1940
          %v2012 = vunpack.c.l.b16 %v1941
          %v2013 = vunpack.c.l.b16 %v1942
          %v2014 = vunpack.c.l.b16 %v1943
          %v2015 = vunpack.c.l.b16 %v1944
          %v2016 = vunpack.c.l.b16 %v1945
          %v2017 = vunpack.c.l.b16 %v1946
          %v2018 = vunpack.c.l.b16 %v1947
          %v2019 = vunpack.c.l.b16 %v1948
          %v2020 = vunpack.c.l.b16 %v1949
          %v2021 = vunpack.c.l.b16 %v1950
          %v2022 = vunpack.c.l.b16 %v1951
          %v2023 = vunpack.c.l.b16 %v1952
          %v2024 = vunpack.c.l.b16 %v1953
          %v2025 = vunpack.c.l.b16 %v1954
          %v2026 = vpack.c.b16 %v1995, %v1994
          %v2027 = vpack.c.b16 %v1997, %v1996
          %v2028 = vpack.c.b16 %v1999, %v1998
          %v2029 = vpack.c.b16 %v2001, %v2000
          %v2030 = vpack.c.b16 %v2003, %v2002
          %v2031 = vpack.c.b16 %v2005, %v2004
          %v2032 = vpack.c.b16 %v2007, %v2006
          %v2033 = vpack.c.b16 %v2009, %v2008
          %v2034 = vpack.c.b16 %v2011, %v2010
          %v2035 = vpack.c.b16 %v2013, %v2012
          %v2036 = vpack.c.b16 %v2015, %v2014
          %v2037 = vpack.c.b16 %v2017, %v2016
          %v2038 = vpack.c.b16 %v2019, %v2018
          %v2039 = vpack.c.b16 %v2021, %v2020
          %v2040 = vpack.c.b16 %v2023, %v2022
          %v2041 = vpack.c.b16 %v2025, %v2024
          %2058 = vmatprep.subr.bf16.mxu0 0
          %2059 = vmatpush1.bf16.msra.mxu0 %v2026
          %2060 = vmatprep.subr.bf16.mxu0 0
          %2061 = vmatpush1.bf16.msra.mxu0 %v2027
          %2062 = vmatprep.subr.bf16.mxu0 0
          %2063 = vmatpush1.bf16.msra.mxu0 %v2028
          %2064 = vmatprep.subr.bf16.mxu0 0
          %2065 = vmatpush1.bf16.msra.mxu0 %v2029
          %2066 = vmatprep.subr.bf16.mxu0 0
          %2067 = vmatpush1.bf16.msra.mxu0 %v2030
          %2068 = vmatprep.subr.bf16.mxu0 0
          %2069 = vmatpush1.bf16.msra.mxu0 %v2031
          %2070 = vmatprep.subr.bf16.mxu0 0
          %2071 = vmatpush1.bf16.msra.mxu0 %v2032
          %2072 = vmatprep.subr.bf16.mxu0 0
          %2073 = vmatpush1.bf16.msra.mxu0 %v2033
          %2074 = vmatprep.subr.bf16.mxu0 0
          %2075 = vmatpush1.bf16.msra.mxu0 %v2034
          %2076 = vmatprep.subr.bf16.mxu0 0
          %2077 = vmatpush1.bf16.msra.mxu0 %v2035
          %2078 = vmatprep.subr.bf16.mxu0 0
          %2079 = vmatpush1.bf16.msra.mxu0 %v2036
          %2080 = vmatprep.subr.bf16.mxu0 0
          %2081 = vmatpush1.bf16.msra.mxu0 %v2037
          %2082 = vmatprep.subr.bf16.mxu0 0
          %2083 = vmatpush1.bf16.msra.mxu0 %v2038
          %2084 = vmatprep.subr.bf16.mxu0 0
          %2085 = vmatpush1.bf16.msra.mxu0 %v2039
          %2086 = vmatprep.subr.bf16.mxu0 0
          %2087 = vmatpush1.bf16.msra.mxu0 %v2040
          %2088 = vmatprep.subr.bf16.mxu0 0
          %2089 = vmatpush1.bf16.msra.mxu0 %v2041
          %2090 = vmatprep.mubr.bf16.mxu0 %v1922
          %2091 = vmatmul.mubr.bf16.gmra.mrb[0].mxu0 %v1921
          %v2092 = vpop.f32.mrb[0].mxu0
          %v2093 = vadd.f32 %v1960, %v2092
          %v2094 = vpop.f32.mrb[0].mxu0
          %v2095 = vpop.f32.mrb[0].mxu0
          %v2096 = vadd.f32 %v1960, %v2095
          %v2097 = vpop.f32.mrb[0].mxu0
          %2098 = vdwg.mxu0
          %v2099 = vtanh.pop %v2093
          %v2100 = vtanh.pop %v2096
          %2101 = vst [vmem:[%s358] sm:$0xff] %v2099
          %2102 = vst [vmem:[%s358 + $0x8] sm:$0xff] %v2100
        $region100: #{_forward.1} parent=47 // pred_fallthru
          _
        %p2103 = scmp.eq.s32.totalorder %s24, 2
        %s2104 = scalar_select %p2103, %s25, 0
        %s2105 = smul.u32 2, %s2104
        %p2106 = scmp.lt.s32.totalorder %s2105, 1
        %s2107 = scalar_select %p2106, %s2105, 1
        %s2108 = smul.addr %s2107, 8
        %s2109 = scalar_lea.vmem %s7, %s2108
        // Predicated region
        $region101: #{_forward.1} parent=47 // pred_check
          %p2110 = pneg %p210
        $region102: #{_forward.1} parent=47 // pred_check_branch
          %2112 = sbr.rel (%p2110) target = $region104
        $region103: #{_forward.1} parent=47 // pred_region
          %p2113 = scmp.eq.s32.totalorder %s24, 2
          %s2114 = scalar_select %p2113, %s25, 0
          %s2115 = smul.u32 2, %s2114
        $region104: #{_forward.1} parent=47 // pred_fallthru
          _
      $region48: #{_forward.1} parent=5 // pred_fallthru
        _
      %p2116 = scmp.le.s32.totalorder 2, %s15
      // Predicated region
      $region105: #{_forward.1} parent=5 // pred_check
        %p2117 = pneg %p2116
      $region106: #{_forward.1} parent=5 // pred_check_branch
        %2119 = sbr.rel (%p2117) target = $region108
      $region107: #{_forward.1} parent=5 // pred_region
        %s2120 = ssub.s32 %s15, 2
        // Predicated region
        $region109: #{_forward.1} parent=107 // pred_check
          %p2121 = pneg %p216
        $region110: #{_forward.1} parent=107 // pred_check_branch
          %2123 = sbr.rel (%p2121) target = $region112
        $region111: #{_forward.1} parent=107 // pred_region
          %p2124 = scmp.eq.s32.totalorder %s26, 2
          %s2125 = scalar_select %p2124, %s27, 0
          %s2126 = smul.u32 2, %s2125
          %p2127 = scmp.lt.s32.totalorder %s2126, 1
          %s2128 = scalar_select %p2127, %s2126, 1
          %s2129 = smul.addr %s2128, 8
          %s2130 = scalar_lea.vmem %s7, %s2129
        $region112: #{_forward.1} parent=107 // pred_fallthru
          _
      $region108: #{_forward.1} parent=5 // pred_fallthru
        _
    $region6: #{_forward.1} parent=1 // loop_footer
      %s19 = sadd.s32 1, %s15
    $region7: #{_forward.1} parent=1 // loop_footer_branch
      %14 = sbr.rel target = $region3
    $region8: #{_forward.1} parent=1 // loop_exit
      _
    %2131 = vsyncpa [#allocation7], 1
    %s2132 = scalar_lea.sflag [#allocation7], 1
    %2133 = vsyncpa %s2132, 1
    %2134 = vsyncpa [#allocation9], 1

</llo_original>
